<compile_context>
chip_gen: v5e
topology: v5e:2x2
jax: 0.10.0
libtpu: 0.0.40
codegen_flags: <defaults>
</compile_context>

<pallas_src>
import jax
import jax.numpy as jnp
import numpy as np
from jax.experimental import pallas as pl
from jax.experimental.pallas import tpu as pltpu


OFF = 2  # left margin (lanes) of the layer-2 frame scratch: the reflect-column
         # fix reads the frame shifted by -2 lanes, which needs these 2 lanes.


# ------------------------------ fused kernel -------------------------------

def _make_double_conv_kernel(W, TH, cin, cmid, cout, lbuf2):
    """Fused (conv3x3 reflect -> +bias -> ReLU) x2 for one (image, row-tile).

    Wide-frame layout: rows of width Wp = W+2 are flattened onto lanes, so in
    a padded frame every 3x3 tap is a contiguous lane slice at offset
    ky*Wp + kx.  Wide output columns {W, W+1} of each row are junk and are
    either overwritten (layer-2 frame halo columns) or stripped by the wrapper
    (final output).
    """
    Wp = W + 2
    L1o = (TH + 2) * Wp     # conv-1 wide output rows = TH + 2 (1 halo row/side)
    L2o = TH * Wp           # conv-2 wide output rows = TH

    def kernel(x_ref, w1_ref, b1_ref, w2_ref, b2_ref, o_ref, p2_ref):
        t = pl.program_id(1)
        t_last = pl.num_programs(1) - 1

        # -------- layer 1: 9 accumulated MXU matmuls on the input window -----
        # x_ref: (cin, Lw) reflect-padded input window (wrapper-built), where
        # Lw = (TH+4)*Wp + 2; the +2 tail covers the (ky=2,kx=2) tap overrun
        # (VMEM has no runtime bounds check - sized explicitly in the wrapper).
        acc1 = jnp.zeros((cmid, L1o), jnp.float32)
        for ky in range(3):
            for kx in range(3):
                s = ky * Wp + kx
                acc1 = acc1 + jnp.dot(
                    w1_ref[ky * 3 + kx],                 # (cmid, cin)
                    x_ref[:, s:s + L1o],                 # (cin,  L1o)
                    preferred_element_type=jnp.float32)
        # f32 epilogue (folded-BN bias + ReLU), stored straight into the
        # layer-2 frame interior with a 1-lane column shift.  Conv-1's junk
        # columns land exactly on the frame's halo columns (fixed below).
        y1 = jnp.maximum(acc1 + b1_ref[...], 0.0)        # (cmid, L1o) f32

        # tiny hygiene zeroes: 3-lane left margin+row0/col0, and the tap tail.
        p2_ref[:, 0:OFF + 1] = jnp.zeros((cmid, OFF + 1), p2_ref.dtype)
        p2_ref[:, OFF + 1:OFF + 1 + L1o] = y1.astype(p2_ref.dtype)
        p2_ref[:, OFF + L1o:lbuf2] = jnp.zeros((cmid, lbuf2 - OFF - L1o),
                                               p2_ref.dtype)

        # layer-2 row reflection at the image top/bottom: the first/last row
        # tile's halo conv-1 row is "virtual" (computed from over-padded input
        # rows); replace it with the true reflected conv-1 row (row 1 / H-2),
        # read back from the frame itself.
        @pl.when(t == 0)
        def _():
            p2_ref[:, OFF + 1:OFF + 1 + W] = \
                p2_ref[:, OFF + 2 * Wp + 1:OFF + 2 * Wp + 1 + W]

        @pl.when(t == t_last)
        def _():
            p2_ref[:, OFF + (TH + 1) * Wp + 1:OFF + (TH + 1) * Wp + 1 + W] = \
                p2_ref[:, OFF + (TH - 1) * Wp + 1:OFF + (TH - 1) * Wp + 1 + W]

        # layer-2 column reflection: padded col 0 <- col 2, col Wp-1 <- col Wp-3
        # (in flat lane space: +2 / -2 lanes).  jnp.where select (no NaN/Inf
        # leak) with in-kernel iota masks; no DMA'd mask arrays.
        lane = jax.lax.broadcasted_iota(jnp.int32, (1, L1o), 1)
        col = lane % Wp
        v = p2_ref[:, OFF:OFF + L1o]
        from_right = p2_ref[:, OFF + 2:OFF + 2 + L1o]
        from_left = p2_ref[:, OFF - 2:OFF - 2 + L1o]
        p2_ref[:, OFF:OFF + L1o] = jnp.where(
            col == 0, from_right, jnp.where(col == Wp - 1, from_left, v))

        # -------- layer 2: 9 accumulated MXU matmuls on the layer-2 frame ----
        acc2 = jnp.zeros((cout, L2o), jnp.float32)
        for ky in range(3):
            for kx in range(3):
                s = OFF + ky * Wp + kx
                acc2 = acc2 + jnp.dot(
                    w2_ref[ky * 3 + kx],                 # (cout, cmid)
                    p2_ref[:, s:s + L2o],                # (cmid, L2o)
                    preferred_element_type=jnp.float32)
        o_ref[...] = jnp.maximum(acc2 + b2_ref[...], 0.0).astype(o_ref.dtype)

    return kernel


def _pick_tile_rows(H, max_rows=64):
    for th in range(min(H, max_rows), 0, -1):
        if H % th == 0:
            return th
    return H


def double_conv_forward(x_nchw, w1, b1, w2, b2, *, tile_rows=None,
                        compute_dtype=jnp.bfloat16, vmem_limit_bytes=None):
    """x: (N, Cin, H, W) f32.  w*: (9, Cout, Cin) tap-major folded weights,
    b*: (Cout, 1) f32 folded biases (from pack_weights + fold_bn)."""
    N, cin, H, W = x_nchw.shape
    cmid, cout = w1.shape[1], w2.shape[1]
    assert w1.shape == (9, cmid, cin) and w2.shape == (9, cout, cmid)
    assert H >= 3 and W >= 3, "reflect padding needs H >= 3 and W >= 3"

    TH = tile_rows if tile_rows is not None else _pick_tile_rows(H)
    assert H % TH == 0, "tile_rows must divide H"
    nt = H // TH
    Wp = W + 2
    Lw = (TH + 4) * Wp + 2          # input window: TH+4 padded rows + 2-lane tail
    L1o = (TH + 2) * Wp             # conv-1 wide output / layer-2 frame length
    L2o = TH * Wp                   # conv-2 wide output per row tile
    lbuf2 = ((OFF + L1o + 2 + 127) // 128) * 128
    # The (ky=2,kx=2) tap reads 2 lanes past the frame end; the buffers carry an
    # explicit tail because VMEM OOB has no runtime check.
    assert lbuf2 >= OFF + L1o + 2

    # ---- layer-1 reflect padding + overlapping row windows (wrapper side) ----
    # Rows padded by 2 (the outermost row only feeds the "virtual" halo conv-1
    # rows, which the kernel overwrites with the true reflected rows); columns
    # padded by 1 (true reflect pad).  Windows overlap by 4 rows -> ~(TH+4)/TH
    # extra input DMA on the smallest tensor, hidden by the pipeline.
    xpad = jnp.pad(x_nchw, ((0, 0), (0, 0), (2, 2), (1, 1)), mode="reflect")
    flat = xpad.reshape(N, cin, (H + 4) * Wp)
    flat = jnp.pad(flat, ((0, 0), (0, 0), (0, 2)))           # zero tap tail
    wins = jnp.stack(
        [flat[:, :, t * TH * Wp: t * TH * Wp + Lw] for t in range(nt)],
        axis=1).astype(compute_dtype)                        # (N, nt, cin, Lw)

    w1c = w1.astype(compute_dtype)
    w2c = w2.astype(compute_dtype)
    b1c = b1.astype(jnp.float32)
    b2c = b2.astype(jnp.float32)

    kernel = _make_double_conv_kernel(W, TH, cin, cmid, cout, lbuf2)

    out = pl.pallas_call(
        kernel,
        out_shape=jax.ShapeDtypeStruct((N, nt, cout, L2o), jnp.float32),
        grid=(N, nt),
        in_specs=[
            pl.BlockSpec((None, None, cin, Lw), lambda n, t: (n, t, 0, 0)),
            pl.BlockSpec((9, cmid, cin), lambda n, t: (0, 0, 0)),
            pl.BlockSpec((cmid, 1), lambda n, t: (0, 0)),
            pl.BlockSpec((9, cout, cmid), lambda n, t: (0, 0, 0)),
            pl.BlockSpec((cout, 1), lambda n, t: (0, 0)),
        ],
        out_specs=pl.BlockSpec((None, None, cout, L2o), lambda n, t: (n, t, 0, 0)),
        scratch_shapes=[pltpu.VMEM((cmid, lbuf2), compute_dtype)],
        compiler_params=pltpu.CompilerParams(
            dimension_semantics=("parallel", "parallel"),
            # At real UNet shapes set this (>32 MiB scoped default on v6e,
            # <=64 MiB physical on v7x) and pick TH so TH*(W+2) ~ 128*k.
            vmem_limit_bytes=vmem_limit_bytes),
    )(wins, w1c, b1c, w2c, b2c)

    # (N, nt, cout, TH*Wp) -> NCHW; the 2 junk columns per wide row are stripped
    # here (one fused XLA copy over the output).
    out = out.reshape(N, nt, cout, TH, Wp).transpose(0, 2, 1, 3, 4)
    return out.reshape(N, cout, H, Wp)[:, :, :, :W]


# ----------------------------- parameter glue ------------------------------

def pack_weights(w_oihw):
    """PyTorch OIHW (Cout, Cin, 3, 3) -> tap-major (9, Cout, Cin), tap=ky*3+kx."""
    co, ci = w_oihw.shape[0], w_oihw.shape[1]
    return jnp.transpose(w_oihw, (2, 3, 0, 1)).reshape(9, co, ci)


def fold_bn(w_packed, conv_bias, gamma, beta, running_mean, running_var, eps=1e-5):
    """Fold eval-mode BatchNorm into the conv: scale into W, the rest into bias."""
    scale = gamma / jnp.sqrt(running_var + eps)
    w_folded = w_packed * scale[None, :, None]
    bias = beta + scale * (conv_bias - running_mean)
    return w_folded, bias[:, None]


# --------------------- independent pure-JAX reference ----------------------

def ref_double_conv(x, w1, b1, g1, be1, rm1, rv1,
                    w2, b2, g2, be2, rm2, rv2, eps=1e-5):
    """Direct PyTorch-semantics reference (unfolded params, real reflect pad)."""
    def layer(x, w, b, g, be, rm, rv):
        xp = jnp.pad(x, ((0, 0), (0, 0), (1, 1), (1, 1)), mode="reflect")
        y = jax.lax.conv_general_dilated(
            xp, w, (1, 1), "VALID", dimension_numbers=("NCHW", "OIHW", "NCHW"),
            precision=jax.lax.Precision.HIGHEST)
        y = y + b[None, :, None, None]
        y = ((y - rm[None, :, None, None])
             * (g[None, :, None, None] / jnp.sqrt(rv[None, :, None, None] + eps))
             + be[None, :, None, None])
        return jnp.maximum(y, 0.0)
    x = layer(x, w1, b1, g1, be1, rm1, rv1)
    x = layer(x, w2, b2, g2, be2, rm2, rv2)
    return x  # Dropout2d(p=0.0) is an identity.


# --------------------------------- main -------------------------------------

if __name__ == "__main__":
    in_channels, out_channels = 4, 8
    mid_channels = out_channels            # DoubleConv default: mid = out
    N, H, W = 2, 16, 16

    keys = jax.random.split(jax.random.PRNGKey(0), 13)

    x_nchw = jax.random.normal(keys[0], (N, in_channels, H, W), jnp.float32)

    # Conv parameters (PyTorch conventions: OIHW weight, (Cout,) bias).
    w1_oihw = 0.1 * jax.random.normal(keys[1], (mid_channels, in_channels, 3, 3), jnp.float32)
    cb1 = 0.1 * jax.random.normal(keys[2], (mid_channels,), jnp.float32)
    w2_oihw = 0.1 * jax.random.normal(keys[3], (out_channels, mid_channels, 3, 3), jnp.float32)
    cb2 = 0.1 * jax.random.normal(keys[4], (out_channels,), jnp.float32)

    # Non-trivial eval-mode BatchNorm parameters (exercises the BN folding).
    g1 = 0.5 + jax.random.uniform(keys[5], (mid_channels,), jnp.float32)
    be1 = 0.1 * jax.random.normal(keys[6], (mid_channels,), jnp.float32)
    rm1 = 0.1 * jax.random.normal(keys[7], (mid_channels,), jnp.float32)
    rv1 = 0.5 + jax.random.uniform(keys[8], (mid_channels,), jnp.float32)
    g2 = 0.5 + jax.random.uniform(keys[9], (out_channels,), jnp.float32)
    be2 = 0.1 * jax.random.normal(keys[10], (out_channels,), jnp.float32)
    rm2 = 0.1 * jax.random.normal(keys[11], (out_channels,), jnp.float32)
    rv2 = 0.5 + jax.random.uniform(keys[12], (out_channels,), jnp.float32)

    w1f, b1f = fold_bn(pack_weights(w1_oihw), cb1, g1, be1, rm1, rv1)
    w2f, b2f = fold_bn(pack_weights(w2_oihw), cb2, g2, be2, rm2, rv2)

    ref = jax.block_until_ready(
        ref_double_conv(x_nchw, w1_oihw, cb1, g1, be1, rm1, rv1,
                        w2_oihw, cb2, g2, be2, rm2, rv2))

    # f32 matmul path (tile_rows=8 -> 2 row tiles: exercises both boundary
    # branches of the tiling).
    out_f32 = jax.block_until_ready(
        double_conv_forward(x_nchw, w1f, b1f, w2f, b2f,
                            tile_rows=8, compute_dtype=jnp.float32))
    assert out_f32.shape == (N, out_channels, H, W)
    err32 = float(np.max(np.abs(np.asarray(out_f32) - np.asarray(ref))))
    assert err32 < 5e-2, f"f32 path error too large: {err32}"

    # bf16 matmul operands (default fast path), f32 accumulate + f32 epilogue.
    out_bf16 = jax.block_until_ready(
        double_conv_forward(x_nchw, w1f, b1f, w2f, b2f, tile_rows=8))
    assert out_bf16.shape == (N, out_channels, H, W)
    err16 = float(np.max(np.abs(np.asarray(out_bf16) - np.asarray(ref))))
    assert err16 < 1e-1, f"bf16 path error too large: {err16}"

    print("KERNEL_OK")
</pallas_src>

<mosaic_0001>
module attributes {stable_mosaic.version = 11 : i64} {
  func.func @kernel(%arg0: i32, %arg1: i32, %arg2: memref<1x1x4x218xf32, #tpu.memory_space<vmem>>, %arg3: memref<9x8x4xf32, #tpu.memory_space<vmem>>, %arg4: memref<8x1xf32, #tpu.memory_space<vmem>>, %arg5: memref<9x8x8xf32, #tpu.memory_space<vmem>>, %arg6: memref<8x1xf32, #tpu.memory_space<vmem>>, %arg7: memref<1x1x8x144xf32, #tpu.memory_space<vmem>>, %arg8: memref<8x256xf32, #tpu.memory_space<vmem>>) attributes {dimension_semantics = [#tpu.dimension_semantics<parallel>, #tpu.dimension_semantics<parallel>], iteration_bounds = array<i64: 2, 2>, scalar_prefetch = 0 : i64, scratch_operands = 1 : i64, tpu.core_type = #tpu.core_type<tc>, window_params = [{transform_indices = @transform_0, window_bounds = array<i64: 1, 1, 4, 218>}, {pipeline_mode = #tpu.pipeline_mode<synchronous>, transform_indices = @transform_1, window_bounds = array<i64: 9, 8, 4>}, {pipeline_mode = #tpu.pipeline_mode<synchronous>, transform_indices = @transform_2, window_bounds = array<i64: 8, 1>}, {pipeline_mode = #tpu.pipeline_mode<synchronous>, transform_indices = @transform_3, window_bounds = array<i64: 9, 8, 8>}, {pipeline_mode = #tpu.pipeline_mode<synchronous>, transform_indices = @transform_4, window_bounds = array<i64: 8, 1>}, {transform_indices = @transform_5, window_bounds = array<i64: 1, 1, 8, 144>}]} {
    %cst = arith.constant 0.000000e+00 : f32
    %0 = vector.broadcast %cst : f32 to vector<8x180xf32>
    %c0 = arith.constant 0 : index
    %c0_0 = arith.constant 0 : index
    %c0_1 = arith.constant 0 : index
    %1 = vector.load %arg3[%c0, %c0_0, %c0_1] : memref<9x8x4xf32, #tpu.memory_space<vmem>>, vector<1x8x4xf32>
    %2 = vector.shape_cast %1 : vector<1x8x4xf32> to vector<8x4xf32>
    %c0_2 = arith.constant 0 : index
    %c0_3 = arith.constant 0 : index
    %c0_4 = arith.constant 0 : index
    %c0_5 = arith.constant 0 : index
    %3 = vector.load %arg2[%c0_2, %c0_3, %c0_4, %c0_5] : memref<1x1x4x218xf32, #tpu.memory_space<vmem>>, vector<1x1x4x180xf32>
    %4 = vector.shape_cast %3 : vector<1x1x4x180xf32> to vector<4x180xf32>
    %cst_6 = arith.constant dense<0.000000e+00> : vector<8x180xf32>
    %5 = tpu.matmul %2, %4, %cst_6 {dimension_numbers = #tpu.dot_dimension_numbers<[1], [0], [0], [1], [0, 0, 1, 1], [], []>} : vector<8x4xf32>, vector<4x180xf32>, vector<8x180xf32> -> vector<8x180xf32>
    %6 = arith.addf %0, %5 : vector<8x180xf32>
    %c1 = arith.constant 1 : index
    %c0_7 = arith.constant 0 : index
    %c0_8 = arith.constant 0 : index
    %7 = vector.load %arg3[%c1, %c0_7, %c0_8] : memref<9x8x4xf32, #tpu.memory_space<vmem>>, vector<1x8x4xf32>
    %8 = vector.shape_cast %7 : vector<1x8x4xf32> to vector<8x4xf32>
    %c0_9 = arith.constant 0 : index
    %c0_10 = arith.constant 0 : index
    %c0_11 = arith.constant 0 : index
    %c1_12 = arith.constant 1 : index
    %9 = vector.load %arg2[%c0_9, %c0_10, %c0_11, %c1_12] : memref<1x1x4x218xf32, #tpu.memory_space<vmem>>, vector<1x1x4x180xf32>
    %10 = vector.shape_cast %9 : vector<1x1x4x180xf32> to vector<4x180xf32>
    %cst_13 = arith.constant dense<0.000000e+00> : vector<8x180xf32>
    %11 = tpu.matmul %8, %10, %cst_13 {dimension_numbers = #tpu.dot_dimension_numbers<[1], [0], [0], [1], [0, 0, 1, 1], [], []>} : vector<8x4xf32>, vector<4x180xf32>, vector<8x180xf32> -> vector<8x180xf32>
    %12 = arith.addf %6, %11 : vector<8x180xf32>
    %c2 = arith.constant 2 : index
    %c0_14 = arith.constant 0 : index
    %c0_15 = arith.constant 0 : index
    %13 = vector.load %arg3[%c2, %c0_14, %c0_15] : memref<9x8x4xf32, #tpu.memory_space<vmem>>, vector<1x8x4xf32>
    %14 = vector.shape_cast %13 : vector<1x8x4xf32> to vector<8x4xf32>
    %c0_16 = arith.constant 0 : index
    %c0_17 = arith.constant 0 : index
    %c0_18 = arith.constant 0 : index
    %c2_19 = arith.constant 2 : index
    %15 = vector.load %arg2[%c0_16, %c0_17, %c0_18, %c2_19] : memref<1x1x4x218xf32, #tpu.memory_space<vmem>>, vector<1x1x4x180xf32>
    %16 = vector.shape_cast %15 : vector<1x1x4x180xf32> to vector<4x180xf32>
    %cst_20 = arith.constant dense<0.000000e+00> : vector<8x180xf32>
    %17 = tpu.matmul %14, %16, %cst_20 {dimension_numbers = #tpu.dot_dimension_numbers<[1], [0], [0], [1], [0, 0, 1, 1], [], []>} : vector<8x4xf32>, vector<4x180xf32>, vector<8x180xf32> -> vector<8x180xf32>
    %18 = arith.addf %12, %17 : vector<8x180xf32>
    %c3 = arith.constant 3 : index
    %c0_21 = arith.constant 0 : index
    %c0_22 = arith.constant 0 : index
    %19 = vector.load %arg3[%c3, %c0_21, %c0_22] : memref<9x8x4xf32, #tpu.memory_space<vmem>>, vector<1x8x4xf32>
    %20 = vector.shape_cast %19 : vector<1x8x4xf32> to vector<8x4xf32>
    %c0_23 = arith.constant 0 : index
    %c0_24 = arith.constant 0 : index
    %c0_25 = arith.constant 0 : index
    %c18 = arith.constant 18 : index
    %21 = vector.load %arg2[%c0_23, %c0_24, %c0_25, %c18] : memref<1x1x4x218xf32, #tpu.memory_space<vmem>>, vector<1x1x4x180xf32>
    %22 = vector.shape_cast %21 : vector<1x1x4x180xf32> to vector<4x180xf32>
    %cst_26 = arith.constant dense<0.000000e+00> : vector<8x180xf32>
    %23 = tpu.matmul %20, %22, %cst_26 {dimension_numbers = #tpu.dot_dimension_numbers<[1], [0], [0], [1], [0, 0, 1, 1], [], []>} : vector<8x4xf32>, vector<4x180xf32>, vector<8x180xf32> -> vector<8x180xf32>
    %24 = arith.addf %18, %23 : vector<8x180xf32>
    %c4 = arith.constant 4 : index
    %c0_27 = arith.constant 0 : index
    %c0_28 = arith.constant 0 : index
    %25 = vector.load %arg3[%c4, %c0_27, %c0_28] : memref<9x8x4xf32, #tpu.memory_space<vmem>>, vector<1x8x4xf32>
    %26 = vector.shape_cast %25 : vector<1x8x4xf32> to vector<8x4xf32>
    %c0_29 = arith.constant 0 : index
    %c0_30 = arith.constant 0 : index
    %c0_31 = arith.constant 0 : index
    %c19 = arith.constant 19 : index
    %27 = vector.load %arg2[%c0_29, %c0_30, %c0_31, %c19] : memref<1x1x4x218xf32, #tpu.memory_space<vmem>>, vector<1x1x4x180xf32>
    %28 = vector.shape_cast %27 : vector<1x1x4x180xf32> to vector<4x180xf32>
    %cst_32 = arith.constant dense<0.000000e+00> : vector<8x180xf32>
    %29 = tpu.matmul %26, %28, %cst_32 {dimension_numbers = #tpu.dot_dimension_numbers<[1], [0], [0], [1], [0, 0, 1, 1], [], []>} : vector<8x4xf32>, vector<4x180xf32>, vector<8x180xf32> -> vector<8x180xf32>
    %30 = arith.addf %24, %29 : vector<8x180xf32>
    %c5 = arith.constant 5 : index
    %c0_33 = arith.constant 0 : index
    %c0_34 = arith.constant 0 : index
    %31 = vector.load %arg3[%c5, %c0_33, %c0_34] : memref<9x8x4xf32, #tpu.memory_space<vmem>>, vector<1x8x4xf32>
    %32 = vector.shape_cast %31 : vector<1x8x4xf32> to vector<8x4xf32>
    %c0_35 = arith.constant 0 : index
    %c0_36 = arith.constant 0 : index
    %c0_37 = arith.constant 0 : index
    %c20 = arith.constant 20 : index
    %33 = vector.load %arg2[%c0_35, %c0_36, %c0_37, %c20] : memref<1x1x4x218xf32, #tpu.memory_space<vmem>>, vector<1x1x4x180xf32>
    %34 = vector.shape_cast %33 : vector<1x1x4x180xf32> to vector<4x180xf32>
    %cst_38 = arith.constant dense<0.000000e+00> : vector<8x180xf32>
    %35 = tpu.matmul %32, %34, %cst_38 {dimension_numbers = #tpu.dot_dimension_numbers<[1], [0], [0], [1], [0, 0, 1, 1], [], []>} : vector<8x4xf32>, vector<4x180xf32>, vector<8x180xf32> -> vector<8x180xf32>
    %36 = arith.addf %30, %35 : vector<8x180xf32>
    %c6 = arith.constant 6 : index
    %c0_39 = arith.constant 0 : index
    %c0_40 = arith.constant 0 : index
    %37 = vector.load %arg3[%c6, %c0_39, %c0_40] : memref<9x8x4xf32, #tpu.memory_space<vmem>>, vector<1x8x4xf32>
    %38 = vector.shape_cast %37 : vector<1x8x4xf32> to vector<8x4xf32>
    %c0_41 = arith.constant 0 : index
    %c0_42 = arith.constant 0 : index
    %c0_43 = arith.constant 0 : index
    %c36 = arith.constant 36 : index
    %39 = vector.load %arg2[%c0_41, %c0_42, %c0_43, %c36] : memref<1x1x4x218xf32, #tpu.memory_space<vmem>>, vector<1x1x4x180xf32>
    %40 = vector.shape_cast %39 : vector<1x1x4x180xf32> to vector<4x180xf32>
    %cst_44 = arith.constant dense<0.000000e+00> : vector<8x180xf32>
    %41 = tpu.matmul %38, %40, %cst_44 {dimension_numbers = #tpu.dot_dimension_numbers<[1], [0], [0], [1], [0, 0, 1, 1], [], []>} : vector<8x4xf32>, vector<4x180xf32>, vector<8x180xf32> -> vector<8x180xf32>
    %42 = arith.addf %36, %41 : vector<8x180xf32>
    %c7 = arith.constant 7 : index
    %c0_45 = arith.constant 0 : index
    %c0_46 = arith.constant 0 : index
    %43 = vector.load %arg3[%c7, %c0_45, %c0_46] : memref<9x8x4xf32, #tpu.memory_space<vmem>>, vector<1x8x4xf32>
    %44 = vector.shape_cast %43 : vector<1x8x4xf32> to vector<8x4xf32>
    %c0_47 = arith.constant 0 : index
    %c0_48 = arith.constant 0 : index
    %c0_49 = arith.constant 0 : index
    %c37 = arith.constant 37 : index
    %45 = vector.load %arg2[%c0_47, %c0_48, %c0_49, %c37] : memref<1x1x4x218xf32, #tpu.memory_space<vmem>>, vector<1x1x4x180xf32>
    %46 = vector.shape_cast %45 : vector<1x1x4x180xf32> to vector<4x180xf32>
    %cst_50 = arith.constant dense<0.000000e+00> : vector<8x180xf32>
    %47 = tpu.matmul %44, %46, %cst_50 {dimension_numbers = #tpu.dot_dimension_numbers<[1], [0], [0], [1], [0, 0, 1, 1], [], []>} : vector<8x4xf32>, vector<4x180xf32>, vector<8x180xf32> -> vector<8x180xf32>
    %48 = arith.addf %42, %47 : vector<8x180xf32>
    %c8 = arith.constant 8 : index
    %c0_51 = arith.constant 0 : index
    %c0_52 = arith.constant 0 : index
    %49 = vector.load %arg3[%c8, %c0_51, %c0_52] : memref<9x8x4xf32, #tpu.memory_space<vmem>>, vector<1x8x4xf32>
    %50 = vector.shape_cast %49 : vector<1x8x4xf32> to vector<8x4xf32>
    %c0_53 = arith.constant 0 : index
    %c0_54 = arith.constant 0 : index
    %c0_55 = arith.constant 0 : index
    %c38 = arith.constant 38 : index
    %51 = vector.load %arg2[%c0_53, %c0_54, %c0_55, %c38] : memref<1x1x4x218xf32, #tpu.memory_space<vmem>>, vector<1x1x4x180xf32>
    %52 = vector.shape_cast %51 : vector<1x1x4x180xf32> to vector<4x180xf32>
    %cst_56 = arith.constant dense<0.000000e+00> : vector<8x180xf32>
    %53 = tpu.matmul %50, %52, %cst_56 {dimension_numbers = #tpu.dot_dimension_numbers<[1], [0], [0], [1], [0, 0, 1, 1], [], []>} : vector<8x4xf32>, vector<4x180xf32>, vector<8x180xf32> -> vector<8x180xf32>
    %54 = arith.addf %48, %53 : vector<8x180xf32>
    %c0_57 = arith.constant 0 : index
    %c0_58 = arith.constant 0 : index
    %55 = vector.load %arg4[%c0_57, %c0_58] : memref<8x1xf32, #tpu.memory_space<vmem>>, vector<8x1xf32>
    %56 = vector.broadcast %55 : vector<8x1xf32> to vector<8x180xf32>
    %57 = arith.addf %54, %56 : vector<8x180xf32>
    %cst_59 = arith.constant 0.000000e+00 : f32
    %58 = vector.broadcast %cst_59 : f32 to vector<8x180xf32>
    %59 = arith.maximumf %57, %58 : vector<8x180xf32>
    %cst_60 = arith.constant 0.000000e+00 : f32
    %60 = vector.broadcast %cst_60 : f32 to vector<8x3xf32>
    %c0_61 = arith.constant 0 : index
    %c0_62 = arith.constant 0 : index
    %61 = vector.load %arg8[%c0_61, %c0_62] : memref<8x256xf32, #tpu.memory_space<vmem>>, vector<8x3xf32>
    tpu.vector_store %arg8[%c0_61, %c0_62], %60 {strides = array<i32>} : memref<8x256xf32, #tpu.memory_space<vmem>>, vector<8x3xf32>,
    %c0_63 = arith.constant 0 : index
    %c3_64 = arith.constant 3 : index
    %62 = vector.load %arg8[%c0_63, %c3_64] : memref<8x256xf32, #tpu.memory_space<vmem>>, vector<8x180xf32>
    tpu.vector_store %arg8[%c0_63, %c3_64], %59 {strides = array<i32>} : memref<8x256xf32, #tpu.memory_space<vmem>>, vector<8x180xf32>,
    %cst_65 = arith.constant 0.000000e+00 : f32
    %63 = vector.broadcast %cst_65 : f32 to vector<8x74xf32>
    %c0_66 = arith.constant 0 : index
    %c182 = arith.constant 182 : index
    %64 = vector.load %arg8[%c0_66, %c182] : memref<8x256xf32, #tpu.memory_space<vmem>>, vector<8x74xf32>
    tpu.vector_store %arg8[%c0_66, %c182], %63 {strides = array<i32>} : memref<8x256xf32, #tpu.memory_space<vmem>>, vector<8x74xf32>,
    %c0_i32 = arith.constant 0 : i32
    %65 = arith.cmpi eq, %arg1, %c0_i32 : i32
    %66 = arith.extui %65 : i1 to i32
    %c0_i32_67 = arith.constant 0 : i32
    %67 = arith.cmpi ne, %66, %c0_i32_67 : i32
    scf.if %67 {
      %c0_141 = arith.constant 0 : index
      %c39_142 = arith.constant 39 : index
      %156 = vector.load %arg8[%c0_141, %c39_142] : memref<8x256xf32, #tpu.memory_space<vmem>>, vector<8x16xf32>
      %c0_143 = arith.constant 0 : index
      %c3_144 = arith.constant 3 : index
      %157 = vector.load %arg8[%c0_143, %c3_144] : memref<8x256xf32, #tpu.memory_space<vmem>>, vector<8x16xf32>
      tpu.vector_store %arg8[%c0_143, %c3_144], %156 {strides = array<i32>} : memref<8x256xf32, #tpu.memory_space<vmem>>, vector<8x16xf32>,
    } else {
    }
    %c1_i32 = arith.constant 1 : i32
    %68 = arith.cmpi eq, %arg1, %c1_i32 : i32
    %69 = arith.extui %68 : i1 to i32
    %c0_i32_68 = arith.constant 0 : i32
    %70 = arith.cmpi ne, %69, %c0_i32_68 : i32
    scf.if %70 {
      %c0_141 = arith.constant 0 : index
      %c129 = arith.constant 129 : index
      %156 = vector.load %arg8[%c0_141, %c129] : memref<8x256xf32, #tpu.memory_space<vmem>>, vector<8x16xf32>
      %c0_142 = arith.constant 0 : index
      %c165 = arith.constant 165 : index
      %157 = vector.load %arg8[%c0_142, %c165] : memref<8x256xf32, #tpu.memory_space<vmem>>, vector<8x16xf32>
      tpu.vector_store %arg8[%c0_142, %c165], %156 {strides = array<i32>} : memref<8x256xf32, #tpu.memory_space<vmem>>, vector<8x16xf32>,
    } else {
    }
    %71 = tpu.iota {dimensions = array<i32: 1>} : vector<1x180xi32>
    %c18_i32 = arith.constant 18 : i32
    %c0_i32_69 = arith.constant 0 : i32
    %72 = arith.cmpi eq, %c18_i32, %c0_i32_69 : i32
    %c1_i32_70 = arith.constant 1 : i32
    %73 = arith.select %72, %c1_i32_70, %c18_i32 : i32
    %74 = vector.broadcast %73 : i32 to vector<1x180xi32>
    %75 = arith.remsi %71, %74 : vector<1x180xi32>
    %c0_i32_71 = arith.constant 0 : i32
    %76 = vector.broadcast %c0_i32_71 : i32 to vector<1x180xi32>
    %77 = arith.cmpi ne, %75, %76 : vector<1x180xi32>
    %c0_i32_72 = arith.constant 0 : i32
    %78 = vector.broadcast %c0_i32_72 : i32 to vector<1x180xi32>
    %79 = arith.cmpi slt, %75, %78 : vector<1x180xi32>
    %c0_i32_73 = arith.constant 0 : i32
    %80 = arith.cmpi slt, %73, %c0_i32_73 : i32
    %81 = vector.broadcast %80 : i1 to vector<1x180xi1>
    %82 = vector.broadcast %81 : vector<1x180xi1> to vector<1x180xi1>
    %83 = arith.xori %79, %82 : vector<1x180xi1>
    %84 = arith.andi %83, %77 : vector<1x180xi1>
    %85 = vector.broadcast %73 : i32 to vector<1x180xi32>
    %86 = arith.addi %75, %85 : vector<1x180xi32>
    %87 = arith.select %84, %86, %75 : vector<1x180xi1>, vector<1x180xi32>
    %c0_74 = arith.constant 0 : index
    %c2_75 = arith.constant 2 : index
    %88 = vector.load %arg8[%c0_74, %c2_75] : memref<8x256xf32, #tpu.memory_space<vmem>>, vector<8x180xf32>
    %c0_76 = arith.constant 0 : index
    %c4_77 = arith.constant 4 : index
    %89 = vector.load %arg8[%c0_76, %c4_77] : memref<8x256xf32, #tpu.memory_space<vmem>>, vector<8x180xf32>
    %c0_78 = arith.constant 0 : index
    %c0_79 = arith.constant 0 : index
    %90 = vector.load %arg8[%c0_78, %c0_79] : memref<8x256xf32, #tpu.memory_space<vmem>>, vector<8x180xf32>
    %c0_i32_80 = arith.constant 0 : i32
    %91 = vector.broadcast %c0_i32_80 : i32 to vector<1x180xi32>
    %92 = arith.cmpi eq, %87, %91 : vector<1x180xi32>
    %c17_i32 = arith.constant 17 : i32
    %93 = vector.broadcast %c17_i32 : i32 to vector<1x180xi32>
    %94 = arith.cmpi eq, %87, %93 : vector<1x180xi32>
    %95 = vector.shape_cast %94 : vector<1x180xi1> to vector<1x180xi1>
    %96 = vector.broadcast %95 : vector<1x180xi1> to vector<8x180xi1>
    %97 = arith.select %96, %90, %88 : vector<8x180xi1>, vector<8x180xf32>
    %98 = vector.shape_cast %92 : vector<1x180xi1> to vector<1x180xi1>
    %99 = vector.broadcast %98 : vector<1x180xi1> to vector<8x180xi1>
    %100 = arith.select %99, %89, %97 : vector<8x180xi1>, vector<8x180xf32>
    %c0_81 = arith.constant 0 : index
    %c2_82 = arith.constant 2 : index
    %101 = vector.load %arg8[%c0_81, %c2_82] : memref<8x256xf32, #tpu.memory_space<vmem>>, vector<8x180xf32>
    tpu.vector_store %arg8[%c0_81, %c2_82], %100 {strides = array<i32>} : memref<8x256xf32, #tpu.memory_space<vmem>>, vector<8x180xf32>,
    %cst_83 = arith.constant 0.000000e+00 : f32
    %102 = vector.broadcast %cst_83 : f32 to vector<8x144xf32>
    %c0_84 = arith.constant 0 : index
    %c0_85 = arith.constant 0 : index
    %c0_86 = arith.constant 0 : index
    %103 = vector.load %arg5[%c0_84, %c0_85, %c0_86] : memref<9x8x8xf32, #tpu.memory_space<vmem>>, vector<1x8x8xf32>
    %104 = vector.shape_cast %103 : vector<1x8x8xf32> to vector<8x8xf32>
    %c0_87 = arith.constant 0 : index
    %c2_88 = arith.constant 2 : index
    %105 = vector.load %arg8[%c0_87, %c2_88] : memref<8x256xf32, #tpu.memory_space<vmem>>, vector<8x144xf32>
    %cst_89 = arith.constant dense<0.000000e+00> : vector<8x144xf32>
    %106 = tpu.matmul %104, %105, %cst_89 {dimension_numbers = #tpu.dot_dimension_numbers<[1], [0], [0], [1], [0, 0, 1, 1], [], []>} : vector<8x8xf32>, vector<8x144xf32>, vector<8x144xf32> -> vector<8x144xf32>
    %107 = arith.addf %102, %106 : vector<8x144xf32>
    %c1_90 = arith.constant 1 : index
    %c0_91 = arith.constant 0 : index
    %c0_92 = arith.constant 0 : index
    %108 = vector.load %arg5[%c1_90, %c0_91, %c0_92] : memref<9x8x8xf32, #tpu.memory_space<vmem>>, vector<1x8x8xf32>
    %109 = vector.shape_cast %108 : vector<1x8x8xf32> to vector<8x8xf32>
    %c0_93 = arith.constant 0 : index
    %c3_94 = arith.constant 3 : index
    %110 = vector.load %arg8[%c0_93, %c3_94] : memref<8x256xf32, #tpu.memory_space<vmem>>, vector<8x144xf32>
    %cst_95 = arith.constant dense<0.000000e+00> : vector<8x144xf32>
    %111 = tpu.matmul %109, %110, %cst_95 {dimension_numbers = #tpu.dot_dimension_numbers<[1], [0], [0], [1], [0, 0, 1, 1], [], []>} : vector<8x8xf32>, vector<8x144xf32>, vector<8x144xf32> -> vector<8x144xf32>
    %112 = arith.addf %107, %111 : vector<8x144xf32>
    %c2_96 = arith.constant 2 : index
    %c0_97 = arith.constant 0 : index
    %c0_98 = arith.constant 0 : index
    %113 = vector.load %arg5[%c2_96, %c0_97, %c0_98] : memref<9x8x8xf32, #tpu.memory_space<vmem>>, vector<1x8x8xf32>
    %114 = vector.shape_cast %113 : vector<1x8x8xf32> to vector<8x8xf32>
    %c0_99 = arith.constant 0 : index
    %c4_100 = arith.constant 4 : index
    %115 = vector.load %arg8[%c0_99, %c4_100] : memref<8x256xf32, #tpu.memory_space<vmem>>, vector<8x144xf32>
    %cst_101 = arith.constant dense<0.000000e+00> : vector<8x144xf32>
    %116 = tpu.matmul %114, %115, %cst_101 {dimension_numbers = #tpu.dot_dimension_numbers<[1], [0], [0], [1], [0, 0, 1, 1], [], []>} : vector<8x8xf32>, vector<8x144xf32>, vector<8x144xf32> -> vector<8x144xf32>
    %117 = arith.addf %112, %116 : vector<8x144xf32>
    %c3_102 = arith.constant 3 : index
    %c0_103 = arith.constant 0 : index
    %c0_104 = arith.constant 0 : index
    %118 = vector.load %arg5[%c3_102, %c0_103, %c0_104] : memref<9x8x8xf32, #tpu.memory_space<vmem>>, vector<1x8x8xf32>
    %119 = vector.shape_cast %118 : vector<1x8x8xf32> to vector<8x8xf32>
    %c0_105 = arith.constant 0 : index
    %c20_106 = arith.constant 20 : index
    %120 = vector.load %arg8[%c0_105, %c20_106] : memref<8x256xf32, #tpu.memory_space<vmem>>, vector<8x144xf32>
    %cst_107 = arith.constant dense<0.000000e+00> : vector<8x144xf32>
    %121 = tpu.matmul %119, %120, %cst_107 {dimension_numbers = #tpu.dot_dimension_numbers<[1], [0], [0], [1], [0, 0, 1, 1], [], []>} : vector<8x8xf32>, vector<8x144xf32>, vector<8x144xf32> -> vector<8x144xf32>
    %122 = arith.addf %117, %121 : vector<8x144xf32>
    %c4_108 = arith.constant 4 : index
    %c0_109 = arith.constant 0 : index
    %c0_110 = arith.constant 0 : index
    %123 = vector.load %arg5[%c4_108, %c0_109, %c0_110] : memref<9x8x8xf32, #tpu.memory_space<vmem>>, vector<1x8x8xf32>
    %124 = vector.shape_cast %123 : vector<1x8x8xf32> to vector<8x8xf32>
    %c0_111 = arith.constant 0 : index
    %c21 = arith.constant 21 : index
    %125 = vector.load %arg8[%c0_111, %c21] : memref<8x256xf32, #tpu.memory_space<vmem>>, vector<8x144xf32>
    %cst_112 = arith.constant dense<0.000000e+00> : vector<8x144xf32>
    %126 = tpu.matmul %124, %125, %cst_112 {dimension_numbers = #tpu.dot_dimension_numbers<[1], [0], [0], [1], [0, 0, 1, 1], [], []>} : vector<8x8xf32>, vector<8x144xf32>, vector<8x144xf32> -> vector<8x144xf32>
    %127 = arith.addf %122, %126 : vector<8x144xf32>
    %c5_113 = arith.constant 5 : index
    %c0_114 = arith.constant 0 : index
    %c0_115 = arith.constant 0 : index
    %128 = vector.load %arg5[%c5_113, %c0_114, %c0_115] : memref<9x8x8xf32, #tpu.memory_space<vmem>>, vector<1x8x8xf32>
    %129 = vector.shape_cast %128 : vector<1x8x8xf32> to vector<8x8xf32>
    %c0_116 = arith.constant 0 : index
    %c22 = arith.constant 22 : index
    %130 = vector.load %arg8[%c0_116, %c22] : memref<8x256xf32, #tpu.memory_space<vmem>>, vector<8x144xf32>
    %cst_117 = arith.constant dense<0.000000e+00> : vector<8x144xf32>
    %131 = tpu.matmul %129, %130, %cst_117 {dimension_numbers = #tpu.dot_dimension_numbers<[1], [0], [0], [1], [0, 0, 1, 1], [], []>} : vector<8x8xf32>, vector<8x144xf32>, vector<8x144xf32> -> vector<8x144xf32>
    %132 = arith.addf %127, %131 : vector<8x144xf32>
    %c6_118 = arith.constant 6 : index
    %c0_119 = arith.constant 0 : index
    %c0_120 = arith.constant 0 : index
    %133 = vector.load %arg5[%c6_118, %c0_119, %c0_120] : memref<9x8x8xf32, #tpu.memory_space<vmem>>, vector<1x8x8xf32>
    %134 = vector.shape_cast %133 : vector<1x8x8xf32> to vector<8x8xf32>
    %c0_121 = arith.constant 0 : index
    %c38_122 = arith.constant 38 : index
    %135 = vector.load %arg8[%c0_121, %c38_122] : memref<8x256xf32, #tpu.memory_space<vmem>>, vector<8x144xf32>
    %cst_123 = arith.constant dense<0.000000e+00> : vector<8x144xf32>
    %136 = tpu.matmul %134, %135, %cst_123 {dimension_numbers = #tpu.dot_dimension_numbers<[1], [0], [0], [1], [0, 0, 1, 1], [], []>} : vector<8x8xf32>, vector<8x144xf32>, vector<8x144xf32> -> vector<8x144xf32>
    %137 = arith.addf %132, %136 : vector<8x144xf32>
    %c7_124 = arith.constant 7 : index
    %c0_125 = arith.constant 0 : index
    %c0_126 = arith.constant 0 : index
    %138 = vector.load %arg5[%c7_124, %c0_125, %c0_126] : memref<9x8x8xf32, #tpu.memory_space<vmem>>, vector<1x8x8xf32>
    %139 = vector.shape_cast %138 : vector<1x8x8xf32> to vector<8x8xf32>
    %c0_127 = arith.constant 0 : index
    %c39 = arith.constant 39 : index
    %140 = vector.load %arg8[%c0_127, %c39] : memref<8x256xf32, #tpu.memory_space<vmem>>, vector<8x144xf32>
    %cst_128 = arith.constant dense<0.000000e+00> : vector<8x144xf32>
    %141 = tpu.matmul %139, %140, %cst_128 {dimension_numbers = #tpu.dot_dimension_numbers<[1], [0], [0], [1], [0, 0, 1, 1], [], []>} : vector<8x8xf32>, vector<8x144xf32>, vector<8x144xf32> -> vector<8x144xf32>
    %142 = arith.addf %137, %141 : vector<8x144xf32>
    %c8_129 = arith.constant 8 : index
    %c0_130 = arith.constant 0 : index
    %c0_131 = arith.constant 0 : index
    %143 = vector.load %arg5[%c8_129, %c0_130, %c0_131] : memref<9x8x8xf32, #tpu.memory_space<vmem>>, vector<1x8x8xf32>
    %144 = vector.shape_cast %143 : vector<1x8x8xf32> to vector<8x8xf32>
    %c0_132 = arith.constant 0 : index
    %c40 = arith.constant 40 : index
    %145 = vector.load %arg8[%c0_132, %c40] : memref<8x256xf32, #tpu.memory_space<vmem>>, vector<8x144xf32>
    %cst_133 = arith.constant dense<0.000000e+00> : vector<8x144xf32>
    %146 = tpu.matmul %144, %145, %cst_133 {dimension_numbers = #tpu.dot_dimension_numbers<[1], [0], [0], [1], [0, 0, 1, 1], [], []>} : vector<8x8xf32>, vector<8x144xf32>, vector<8x144xf32> -> vector<8x144xf32>
    %147 = arith.addf %142, %146 : vector<8x144xf32>
    %c0_134 = arith.constant 0 : index
    %c0_135 = arith.constant 0 : index
    %148 = vector.load %arg6[%c0_134, %c0_135] : memref<8x1xf32, #tpu.memory_space<vmem>>, vector<8x1xf32>
    %149 = vector.broadcast %148 : vector<8x1xf32> to vector<8x144xf32>
    %150 = arith.addf %147, %149 : vector<8x144xf32>
    %cst_136 = arith.constant 0.000000e+00 : f32
    %151 = vector.broadcast %cst_136 : f32 to vector<8x144xf32>
    %152 = arith.maximumf %150, %151 : vector<8x144xf32>
    %c0_137 = arith.constant 0 : index
    %c0_138 = arith.constant 0 : index
    %c0_139 = arith.constant 0 : index
    %c0_140 = arith.constant 0 : index
    %153 = vector.load %arg7[%c0_137, %c0_138, %c0_139, %c0_140] : memref<1x1x8x144xf32, #tpu.memory_space<vmem>>, vector<1x1x8x144xf32>
    %154 = vector.shape_cast %153 : vector<1x1x8x144xf32> to vector<8x144xf32>
    %155 = vector.shape_cast %152 : vector<8x144xf32> to vector<1x1x8x144xf32>
    tpu.vector_store %arg7[%c0_137, %c0_138, %c0_139, %c0_140], %155 {strides = array<i32>} : memref<1x1x8x144xf32, #tpu.memory_space<vmem>>, vector<1x1x8x144xf32>,
    return
  }
  func.func @transform_0(%arg0: i32, %arg1: i32) -> (i32, i32, i32, i32) {
    %c0_i32 = arith.constant 0 : i32
    %c0_i32_0 = arith.constant 0 : i32
    %c0_i32_1 = arith.constant 0 : i32
    return %arg0, %arg1, %c0_i32, %c0_i32_0 : i32, i32, i32, i32
  }
  func.func @transform_1(%arg0: i32, %arg1: i32) -> (i32, i32, i32) {
    %c0_i32 = arith.constant 0 : i32
    %c0_i32_0 = arith.constant 0 : i32
    %c0_i32_1 = arith.constant 0 : i32
    %c0_i32_2 = arith.constant 0 : i32
    return %c0_i32, %c0_i32_0, %c0_i32_1 : i32, i32, i32
  }
  func.func @transform_2(%arg0: i32, %arg1: i32) -> (i32, i32) {
    %c0_i32 = arith.constant 0 : i32
    %c0_i32_0 = arith.constant 0 : i32
    %c0_i32_1 = arith.constant 0 : i32
    return %c0_i32, %c0_i32_0 : i32, i32
  }
  func.func @transform_3(%arg0: i32, %arg1: i32) -> (i32, i32, i32) {
    %c0_i32 = arith.constant 0 : i32
    %c0_i32_0 = arith.constant 0 : i32
    %c0_i32_1 = arith.constant 0 : i32
    %c0_i32_2 = arith.constant 0 : i32
    return %c0_i32, %c0_i32_0, %c0_i32_1 : i32, i32, i32
  }
  func.func @transform_4(%arg0: i32, %arg1: i32) -> (i32, i32) {
    %c0_i32 = arith.constant 0 : i32
    %c0_i32_0 = arith.constant 0 : i32
    %c0_i32_1 = arith.constant 0 : i32
    return %c0_i32, %c0_i32_0 : i32, i32
  }
  func.func @transform_5(%arg0: i32, %arg1: i32) -> (i32, i32, i32, i32) {
    %c0_i32 = arith.constant 0 : i32
    %c0_i32_0 = arith.constant 0 : i32
    %c0_i32_1 = arith.constant 0 : i32
    return %arg0, %arg1, %c0_i32, %c0_i32_0 : i32, i32, i32, i32
  }
}

</mosaic_0001>

<llo_original>
// kernel: tpu_custom_call.1
$region0: #{tpu_custom_call.1}
  #allocation0 [shape = 'u32[]', space=smem, size = 0x4, offset = 0x4, fixed_abs, tag = 'smem constant byte address 0x4 - core index']
  #allocation1 [shape = 'u32[72,128]{1,0:T(1,128)}', space=vmem, size = 0x9000, scoped, tag = 'internal scratch']
  #allocation2 [shape = 'f32[8,256]{1,0:T(8,128)}', space=vmem, size = 0x2000, scoped, tag = 'scratch operand']
  %s0 = inlined_call_operand.vmem [shape: f32[2,2,4,218], index: 0, kind: input, shape index: {}]
  %s1 = inlined_call_operand.vmem [shape: f32[9,8,4], index: 1, kind: input, shape index: {}]
  %s2 = inlined_call_operand.vmem [shape: f32[8,1], index: 2, kind: input, shape index: {}]
  %s3 = inlined_call_operand.vmem [shape: f32[9,8,8], index: 3, kind: input, shape index: {}]
  %s4 = inlined_call_operand.vmem [shape: f32[8,1], index: 4, kind: input, shape index: {}]
  %s5 = inlined_call_operand.hbm [shape: f32[2,2,8,144], index: 5, kind: output, shape index: {}]
  %s6 = sld [smem:[#allocation0]]
  $region61: #{tpu_custom_call.1} parent=0
    _
  %s8 = ssub.s32 1, %s6
  %s9 = scalar_select 0, %s8, %s6
  $region1: #{tpu_custom_call.1} parent=0
    #allocation3 [shape = 'u8[16384]{0}', space=vmem, size = 0x4000, scoped, tag = 'output window, operand 0']
    #allocation4 [shape = 's32[2]{0}', space=sflag, size = 0x8, scoped, tag = 'scoped memory for tpu_custom_call.1']
    %10 = vsyncpa [#allocation4], 0
    %s11 = scalar_lea.sflag [#allocation4], 1
    %12 = vsyncpa %s11, 0
    loop: start=0, step=1, limit=6
    $region2: #{tpu_custom_call.1} parent=1 // loop_pre_header
      _
    $region3: #{tpu_custom_call.1} parent=1 // loop_header
      %s14 = sphi 0, %s18
      %p15 = scmp.ge.s32.totalorder %s14, 6
      %s21 = sphi 0, %s33
      %s22 = sphi 0, %s29
      %s23 = sphi 0, %s21
      %s24 = sphi 0, %s22
      %s25 = sphi 0, %s23
      %s26 = sphi 0, %s24
      %s38 = sphi 0, %s40
      %s41 = sphi 0, %s38
      %s42 = sphi 0, %s41
      %s58 = sphi 0, %s42
      %s62 = sphi 0, %s62
      %s64 = sphi 0, %s62
      %s65 = sphi 0, %s64
      %s79 = sphi 0, %s65
      %s83 = sphi 0, %s83
      %s85 = sphi 0, %s83
      %s86 = sphi 0, %s85
      %s100 = sphi 0, %s86
      %s104 = sphi 0, %s104
      %s106 = sphi 0, %s104
      %s107 = sphi 0, %s106
      %s121 = sphi 0, %s107
      %s125 = sphi 0, %s125
      %s127 = sphi 0, %s125
      %s128 = sphi 0, %s127
      %s142 = sphi 0, %s128
      %s150 = sphi 0, %s152
      %s153 = sphi 0, %s150
      %s154 = sphi 0, %s153
      %s170 = sphi 0, %s154
    $region4: #{tpu_custom_call.1} parent=1 // loop_header_branch
      %17 = sbr.rel (%p15) target = $region8
    $region5: #{tpu_custom_call.1} parent=1 // loop_body
      %s19 = ssub.s32 %s14, 1
      %s20 = ssub.s32 %s14, 2
      %s27 = sadd.s32 1, %s22
      %p28 = scmp.ge.s32.totalorder %s27, 2
      %s29 = scalar_select %p28, 0, %s27
      %s30 = sadd.s32 1, %s21
      %s31 = scalar_select %p28, %s30, %s21
      %p32 = scmp.ge.s32.totalorder %s31, 2
      %s33 = scalar_select %p32, 0, %s31
      %s34 = ssub.s32 %s21, %s33
      %s35 = ssub.s32 %s22, %s29
      %s36 = sor.u32 %s34, %s35
      %p37 = scmp.eq.s32.totalorder %s36, 0
      %s39 = sadd.s32 %s38, 1
      %s40 = scalar_select %p37, %s38, %s39
      %p43 = pneg %p37
      %p44 = scmp.eq.s32.totalorder %s14, 3
      %p45 = por %p43, %p44
      %p46 = scmp.ne.s32.totalorder %s38, %s41
      %p47 = scmp.eq.s32.totalorder %s14, 0
      %p48 = por %p46, %p47
      %p49 = scmp.ne.s32.totalorder %s38, %s41
      %p50 = scmp.eq.s32.totalorder %s19, 3
      %p51 = por %p49, %p50
      %p52 = scmp.ne.s32.totalorder %s41, %s42
      %p53 = scmp.eq.s32.totalorder %s19, 0
      %p54 = por %p52, %p53
      %p55 = scmp.ne.s32.totalorder %s41, %s42
      %p56 = scmp.eq.s32.totalorder %s20, 3
      %p57 = por %p55, %p56
      %p59 = scmp.ne.s32.totalorder %s42, %s58
      %p60 = scmp.eq.s32.totalorder %s20, 0
      %p61 = por %p59, %p60
      %s63 = sadd.s32 %s62, 1
      %p66 = scmp.eq.s32.totalorder %s14, 3
      %p67 = scmp.ne.s32.totalorder %s62, %s64
      %p68 = scmp.eq.s32.totalorder %s14, 0
      %p69 = por %p67, %p68
      %p70 = scmp.ne.s32.totalorder %s62, %s64
      %p71 = scmp.eq.s32.totalorder %s19, 3
      %p72 = por %p70, %p71
      %p73 = scmp.ne.s32.totalorder %s64, %s65
      %p74 = scmp.eq.s32.totalorder %s19, 0
      %p75 = por %p73, %p74
      %p76 = scmp.ne.s32.totalorder %s64, %s65
      %p77 = scmp.eq.s32.totalorder %s20, 3
      %p78 = por %p76, %p77
      %p80 = scmp.ne.s32.totalorder %s65, %s79
      %p81 = scmp.eq.s32.totalorder %s20, 0
      %p82 = por %p80, %p81
      %s84 = sadd.s32 %s83, 1
      %p87 = scmp.eq.s32.totalorder %s14, 3
      %p88 = scmp.ne.s32.totalorder %s83, %s85
      %p89 = scmp.eq.s32.totalorder %s14, 0
      %p90 = por %p88, %p89
      %p91 = scmp.ne.s32.totalorder %s83, %s85
      %p92 = scmp.eq.s32.totalorder %s19, 3
      %p93 = por %p91, %p92
      %p94 = scmp.ne.s32.totalorder %s85, %s86
      %p95 = scmp.eq.s32.totalorder %s19, 0
      %p96 = por %p94, %p95
      %p97 = scmp.ne.s32.totalorder %s85, %s86
      %p98 = scmp.eq.s32.totalorder %s20, 3
      %p99 = por %p97, %p98
      %p101 = scmp.ne.s32.totalorder %s86, %s100
      %p102 = scmp.eq.s32.totalorder %s20, 0
      %p103 = por %p101, %p102
      %s105 = sadd.s32 %s104, 1
      %p108 = scmp.eq.s32.totalorder %s14, 3
      %p109 = scmp.ne.s32.totalorder %s104, %s106
      %p110 = scmp.eq.s32.totalorder %s14, 0
      %p111 = por %p109, %p110
      %p112 = scmp.ne.s32.totalorder %s104, %s106
      %p113 = scmp.eq.s32.totalorder %s19, 3
      %p114 = por %p112, %p113
      %p115 = scmp.ne.s32.totalorder %s106, %s107
      %p116 = scmp.eq.s32.totalorder %s19, 0
      %p117 = por %p115, %p116
      %p118 = scmp.ne.s32.totalorder %s106, %s107
      %p119 = scmp.eq.s32.totalorder %s20, 3
      %p120 = por %p118, %p119
      %p122 = scmp.ne.s32.totalorder %s107, %s121
      %p123 = scmp.eq.s32.totalorder %s20, 0
      %p124 = por %p122, %p123
      %s126 = sadd.s32 %s125, 1
      %p129 = scmp.eq.s32.totalorder %s14, 3
      %p130 = scmp.ne.s32.totalorder %s125, %s127
      %p131 = scmp.eq.s32.totalorder %s14, 0
      %p132 = por %p130, %p131
      %p133 = scmp.ne.s32.totalorder %s125, %s127
      %p134 = scmp.eq.s32.totalorder %s19, 3
      %p135 = por %p133, %p134
      %p136 = scmp.ne.s32.totalorder %s127, %s128
      %p137 = scmp.eq.s32.totalorder %s19, 0
      %p138 = por %p136, %p137
      %p139 = scmp.ne.s32.totalorder %s127, %s128
      %p140 = scmp.eq.s32.totalorder %s20, 3
      %p141 = por %p139, %p140
      %p143 = scmp.ne.s32.totalorder %s128, %s142
      %p144 = scmp.eq.s32.totalorder %s20, 0
      %p145 = por %p143, %p144
      %s146 = ssub.s32 %s21, %s33
      %s147 = ssub.s32 %s22, %s29
      %s148 = sor.u32 %s146, %s147
      %p149 = scmp.eq.s32.totalorder %s148, 0
      %s151 = sadd.s32 %s150, 1
      %s152 = scalar_select %p149, %s150, %s151
      %p155 = pneg %p149
      %p156 = scmp.eq.s32.totalorder %s14, 3
      %p157 = por %p155, %p156
      %p158 = scmp.ne.s32.totalorder %s150, %s153
      %p159 = scmp.eq.s32.totalorder %s14, 0
      %p160 = por %p158, %p159
      %p161 = scmp.ne.s32.totalorder %s150, %s153
      %p162 = scmp.eq.s32.totalorder %s19, 3
      %p163 = por %p161, %p162
      %p164 = scmp.ne.s32.totalorder %s153, %s154
      %p165 = scmp.eq.s32.totalorder %s19, 0
      %p166 = por %p164, %p165
      %p167 = scmp.ne.s32.totalorder %s153, %s154
      %p168 = scmp.eq.s32.totalorder %s20, 3
      %p169 = por %p167, %p168
      %p171 = scmp.ne.s32.totalorder %s154, %s170
      %p172 = scmp.eq.s32.totalorder %s20, 0
      %p173 = por %p171, %p172
      %p174 = scmp.le.s32.totalorder 1, %s14
      %p175 = scmp.lt.s32.totalorder %s14, 5
      %p176 = pnand %p174, %p175
      %p177 = pneg %p176
      // Predicated region
      $region9: #{tpu_custom_call.1} parent=5 // pred_check
        _
      $region10: #{tpu_custom_call.1} parent=5 // pred_check_branch
        %179 = sbr.rel (%p176) target = $region12
      $region11: #{tpu_custom_call.1} parent=5 // pred_region
        %s180 = ssub.s32 %s14, 1
        // Predicated region
        $region13: #{tpu_custom_call.1} parent=11 // pred_check
          %p181 = pneg %p75
        $region14: #{tpu_custom_call.1} parent=11 // pred_check_branch
          %183 = sbr.rel (%p181) target = $region16
        $region15: #{tpu_custom_call.1} parent=11 // pred_region
          _
        $region16: #{tpu_custom_call.1} parent=11 // pred_fallthru
          _
        // Predicated region
        $region17: #{tpu_custom_call.1} parent=11 // pred_check
          %p184 = pneg %p96
        $region18: #{tpu_custom_call.1} parent=11 // pred_check_branch
          %186 = sbr.rel (%p184) target = $region20
        $region19: #{tpu_custom_call.1} parent=11 // pred_region
          _
        $region20: #{tpu_custom_call.1} parent=11 // pred_fallthru
          _
        // Predicated region
        $region21: #{tpu_custom_call.1} parent=11 // pred_check
          %p187 = pneg %p117
        $region22: #{tpu_custom_call.1} parent=11 // pred_check_branch
          %189 = sbr.rel (%p187) target = $region24
        $region23: #{tpu_custom_call.1} parent=11 // pred_region
          _
        $region24: #{tpu_custom_call.1} parent=11 // pred_fallthru
          _
        // Predicated region
        $region25: #{tpu_custom_call.1} parent=11 // pred_check
          %p190 = pneg %p138
        $region26: #{tpu_custom_call.1} parent=11 // pred_check_branch
          %192 = sbr.rel (%p190) target = $region28
        $region27: #{tpu_custom_call.1} parent=11 // pred_region
          _
        $region28: #{tpu_custom_call.1} parent=11 // pred_fallthru
          _
      $region12: #{tpu_custom_call.1} parent=5 // pred_fallthru
        _
      %p193 = scmp.lt.s32.totalorder %s14, 4
      // Predicated region
      $region29: #{tpu_custom_call.1} parent=5 // pred_check
        %p194 = pneg %p193
      $region30: #{tpu_custom_call.1} parent=5 // pred_check_branch
        %196 = sbr.rel (%p194) target = $region32
      $region31: #{tpu_custom_call.1} parent=5 // pred_region
        // Predicated region
        $region33: #{tpu_custom_call.1} parent=31 // pred_check
          %p197 = pneg %p48
        $region34: #{tpu_custom_call.1} parent=31 // pred_check_branch
          %199 = sbr.rel (%p197) target = $region36
        $region35: #{tpu_custom_call.1} parent=31 // pred_region
          %p200 = scmp.lt.s32.totalorder %s21, 1
          %s201 = scalar_select %p200, %s21, 1
          %p202 = scmp.lt.s32.totalorder %s22, 1
          %s203 = scalar_select %p202, %s22, 1
          %s204 = smul.addr %s203, 2
          %s205 = smul.addr %s201, 4
          %s206 = sadd.s32 %s204, %s205
          %s207 = smul.addr %s206, 4
          %s208 = scalar_lea.vmem %s0, %s207
        $region36: #{tpu_custom_call.1} parent=31 // pred_fallthru
          _
      $region32: #{tpu_custom_call.1} parent=5 // pred_fallthru
        _
      %p209 = scmp.le.s32.totalorder 1, %s14
      %p210 = scmp.lt.s32.totalorder %s14, 5
      %p211 = pnand %p209, %p210
      %p212 = pneg %p211
      // Predicated region
      $region37: #{tpu_custom_call.1} parent=5 // pred_check
        _
      $region38: #{tpu_custom_call.1} parent=5 // pred_check_branch
        %214 = sbr.rel (%p211) target = $region40
      $region39: #{tpu_custom_call.1} parent=5 // pred_region
        %s215 = ssub.s32 %s14, 1
        %p216 = scmp.lt.s32.totalorder %s23, 1
        %s217 = scalar_select %p216, %s23, 1
        %p218 = scmp.lt.s32.totalorder %s24, 1
        %s219 = scalar_select %p218, %s24, 1
        %s220 = smul.addr %s219, 2
        %s221 = smul.addr %s217, 4
        %s222 = sadd.s32 %s220, %s221
        %s223 = smul.addr %s222, 4
        %s224 = scalar_lea.vmem %s0, %s223
        %p225 = pneg %p54
        %p226 = pneg %p51
        %p227 = pneg %p75
        %p228 = pneg %p72
        %p229 = pneg %p96
        %p230 = pneg %p93
        %p231 = pneg %p117
        %p232 = pneg %p114
        %p233 = pneg %p138
        %p234 = pneg %p135
        %p235 = pneg %p166
        %p236 = pneg %p163
        %s237 = sand.u32 %s153, 1
        %s238 = scalar_lea.sflag [#allocation4], %s237
        %s239 = sand.u32 %s153, 1
        %s240 = smul.addr %s239, 16
        %s241 = scalar_lea.vmem [#allocation3], %s240
        %p242 = scmp.lt.s32.totalorder %s23, 1
        %s243 = scalar_select %p242, %s23, 1
        %p244 = scmp.lt.s32.totalorder %s24, 1
        %s245 = scalar_select %p244, %s24, 1
        %s246 = smul.addr %s245, 2
        %s247 = smul.addr %s243, 4
        %s248 = sadd.s32 %s246, %s247
        %s249 = smul.addr %s248, 4
        %s250 = scalar_lea.vmem %s0, %s249
        %v251 = vld [vmem:[%s1] sm:$0xff]
        %v252 = vld [vmem:[%s250] sm:$0xff]
        %s253 = scalar_lea.vmem %s1, 8
        %v254 = vld [vmem:[%s253] sm:$0xff]
        %256 = vst [vmem:[#allocation1] ss:$2 sm:$0xff] %v252
        %v257 = vld.sshfl [vmem:[#allocation1] sm:$0xff pattern:$0x75316420]
        %v258 = vld.sshfl [vmem:[#allocation1 + $0x8] sm:$0xff pattern:$0x75316420]
        %259 = vrot.lane.b32.xlu0 %v257, 127
        %v260 = vpop.permute.xlu0 %259
        %261 = vrot.lane.b32.xlu0 %v258, 127
        %v262 = vpop.permute.xlu0 %261
        %vm263 = vcmask 1039360
        %v264 = vsel %vm263, %v260, %v262
        %vm265 = vcmask 31744
        %v267 = vsel %vm265, %v254, 0
        %vm269 = vcmask 1043456
        %v270 = vsel %vm269, %v264, 0
        %v272 = vsel %vm269, %v262, 0
        %274 = vmatpush.msra.mxu0 0.0
        %275 = vmatpush.msra.mxu0 0.0
        %276 = vmatpush.msra.mxu0 0.0
        %277 = vmatpush.msra.mxu0 0.0
        %278 = vmatpush.msra.mxu0 0.0
        %279 = vmatpush.msra.mxu0 0.0
        %280 = vmatpush.msra.mxu0 0.0
        %281 = vmatpush.msra.mxu0 0.0
        %282 = vmatpush.msra.mxu0 0.0
        %283 = vmatpush.msra.mxu0 0.0
        %284 = vmatpush.msra.mxu0 0.0
        %285 = vmatpush.msra.mxu0 0.0
        %286 = vmatpush.msra.mxu0 0.0
        %287 = vmatpush.msra.mxu0 0.0
        %288 = vmatpush.msra.mxu0 0.0
        %289 = vmatpush.msra.mxu0 %v270
        %290 = vmatmul.f32.gmra.mxu0 %v267
        %v291 = vpop.f32.mrf.mxu0
        %v292 = vadd.f32 0.0, %v291
        %293 = vdwg.mxu0
        %294 = vmatpush.msra.mxu0 0.0
        %295 = vmatpush.msra.mxu0 0.0
        %296 = vmatpush.msra.mxu0 0.0
        %297 = vmatpush.msra.mxu0 0.0
        %298 = vmatpush.msra.mxu0 0.0
        %299 = vmatpush.msra.mxu0 0.0
        %300 = vmatpush.msra.mxu0 0.0
        %301 = vmatpush.msra.mxu0 0.0
        %302 = vmatpush.msra.mxu0 0.0
        %303 = vmatpush.msra.mxu0 0.0
        %304 = vmatpush.msra.mxu0 0.0
        %305 = vmatpush.msra.mxu0 0.0
        %306 = vmatpush.msra.mxu0 0.0
        %307 = vmatpush.msra.mxu0 0.0
        %308 = vmatpush.msra.mxu0 0.0
        %309 = vmatpush.msra.mxu0 %v272
        %310 = vmatmul.f32.gmra.mxu0 %v267
        %v311 = vpop.f32.mrf.mxu0
        %v312 = vadd.f32 0.0, %v311
        %313 = vdwg.mxu0
        %314 = vst [vmem:[#allocation1] ss:$2 sm:$0xff] %v252
        %v315 = vld.sshfl [vmem:[#allocation1] sm:$0xff pattern:$0x75316420]
        %v316 = vld.sshfl [vmem:[#allocation1 + $0x8] sm:$0xff pattern:$0x75316420]
        %v318 = vsel %vm265, %v251, 0
        %v320 = vsel %vm269, %v315, 0
        %v322 = vsel %vm269, %v316, 0
        %324 = vmatpush.msra.mxu0 0.0
        %325 = vmatpush.msra.mxu0 0.0
        %326 = vmatpush.msra.mxu0 0.0
        %327 = vmatpush.msra.mxu0 0.0
        %328 = vmatpush.msra.mxu0 0.0
        %329 = vmatpush.msra.mxu0 0.0
        %330 = vmatpush.msra.mxu0 0.0
        %331 = vmatpush.msra.mxu0 0.0
        %332 = vmatpush.msra.mxu0 0.0
        %333 = vmatpush.msra.mxu0 0.0
        %334 = vmatpush.msra.mxu0 0.0
        %335 = vmatpush.msra.mxu0 0.0
        %336 = vmatpush.msra.mxu0 0.0
        %337 = vmatpush.msra.mxu0 0.0
        %338 = vmatpush.msra.mxu0 0.0
        %339 = vmatpush.msra.mxu0 %v320
        %340 = vmatmul.f32.gmra.mxu0 %v318
        %v341 = vpop.f32.mrf.mxu0
        %v342 = vadd.f32 %v292, %v341
        %343 = vdwg.mxu0
        %344 = vmatpush.msra.mxu0 0.0
        %345 = vmatpush.msra.mxu0 0.0
        %346 = vmatpush.msra.mxu0 0.0
        %347 = vmatpush.msra.mxu0 0.0
        %348 = vmatpush.msra.mxu0 0.0
        %349 = vmatpush.msra.mxu0 0.0
        %350 = vmatpush.msra.mxu0 0.0
        %351 = vmatpush.msra.mxu0 0.0
        %352 = vmatpush.msra.mxu0 0.0
        %353 = vmatpush.msra.mxu0 0.0
        %354 = vmatpush.msra.mxu0 0.0
        %355 = vmatpush.msra.mxu0 0.0
        %356 = vmatpush.msra.mxu0 0.0
        %357 = vmatpush.msra.mxu0 0.0
        %358 = vmatpush.msra.mxu0 0.0
        %359 = vmatpush.msra.mxu0 %v322
        %360 = vmatmul.f32.gmra.mxu0 %v318
        %v361 = vpop.f32.mrf.mxu0
        %v362 = vadd.f32 %v312, %v361
        %363 = vdwg.mxu0
        %s364 = scalar_lea.vmem %s1, 16
        %v365 = vld [vmem:[%s364] sm:$0xff]
        %v366 = vld [vmem:[%s250] sm:$0xff]
        %368 = vst [vmem:[#allocation1] ss:$2 sm:$0xff] %v366
        %v369 = vld.sshfl [vmem:[#allocation1] sm:$0xff pattern:$0x75316420]
        %v370 = vld.sshfl [vmem:[#allocation1 + $0x8] sm:$0xff pattern:$0x75316420]
        %371 = vrot.lane.b32.xlu0 %v369, 126
        %v372 = vpop.permute.xlu0 %371
        %373 = vrot.lane.b32.xlu0 %v370, 126
        %v374 = vpop.permute.xlu0 %373
        %vm375 = vcmask 1031168
        %v376 = vsel %vm375, %v372, %v374
        %v378 = vsel %vm265, %v365, 0
        %v380 = vsel %vm269, %v376, 0
        %v382 = vsel %vm269, %v374, 0
        %384 = vmatpush.msra.mxu0 0.0
        %385 = vmatpush.msra.mxu0 0.0
        %386 = vmatpush.msra.mxu0 0.0
        %387 = vmatpush.msra.mxu0 0.0
        %388 = vmatpush.msra.mxu0 0.0
        %389 = vmatpush.msra.mxu0 0.0
        %390 = vmatpush.msra.mxu0 0.0
        %391 = vmatpush.msra.mxu0 0.0
        %392 = vmatpush.msra.mxu0 0.0
        %393 = vmatpush.msra.mxu0 0.0
        %394 = vmatpush.msra.mxu0 0.0
        %395 = vmatpush.msra.mxu0 0.0
        %396 = vmatpush.msra.mxu0 0.0
        %397 = vmatpush.msra.mxu0 0.0
        %398 = vmatpush.msra.mxu0 0.0
        %399 = vmatpush.msra.mxu0 %v380
        %400 = vmatmul.f32.gmra.mxu0 %v378
        %v401 = vpop.f32.mrf.mxu0
        %v402 = vadd.f32 0.0, %v401
        %403 = vdwg.mxu0
        %404 = vmatpush.msra.mxu0 0.0
        %405 = vmatpush.msra.mxu0 0.0
        %406 = vmatpush.msra.mxu0 0.0
        %407 = vmatpush.msra.mxu0 0.0
        %408 = vmatpush.msra.mxu0 0.0
        %409 = vmatpush.msra.mxu0 0.0
        %410 = vmatpush.msra.mxu0 0.0
        %411 = vmatpush.msra.mxu0 0.0
        %412 = vmatpush.msra.mxu0 0.0
        %413 = vmatpush.msra.mxu0 0.0
        %414 = vmatpush.msra.mxu0 0.0
        %415 = vmatpush.msra.mxu0 0.0
        %416 = vmatpush.msra.mxu0 0.0
        %417 = vmatpush.msra.mxu0 0.0
        %418 = vmatpush.msra.mxu0 0.0
        %419 = vmatpush.msra.mxu0 %v382
        %420 = vmatmul.f32.gmra.mxu0 %v378
        %v421 = vpop.f32.mrf.mxu0
        %v422 = vadd.f32 0.0, %v421
        %423 = vdwg.mxu0
        %v424 = vadd.f32 %v342, %v402
        %v425 = vadd.f32 %v362, %v422
        %s426 = scalar_lea.vmem %s1, 24
        %v427 = vld [vmem:[%s426] sm:$0xff]
        %v428 = vld [vmem:[%s250] sm:$0xff]
        %430 = vst [vmem:[#allocation1] ss:$2 sm:$0xff] %v428
        %v431 = vld.sshfl [vmem:[#allocation1] sm:$0xff pattern:$0x75316420]
        %v432 = vld.sshfl [vmem:[#allocation1 + $0x8] sm:$0xff pattern:$0x75316420]
        %433 = vrot.lane.b32.xlu0 %v431, 110
        %v434 = vpop.permute.xlu0 %433
        %435 = vrot.lane.b32.xlu0 %v432, 110
        %v436 = vpop.permute.xlu0 %435
        %vm437 = vcmask 900096
        %v438 = vsel %vm437, %v434, %v436
        %v440 = vsel %vm265, %v427, 0
        %v442 = vsel %vm269, %v438, 0
        %v444 = vsel %vm269, %v436, 0
        %446 = vmatpush.msra.mxu0 0.0
        %447 = vmatpush.msra.mxu0 0.0
        %448 = vmatpush.msra.mxu0 0.0
        %449 = vmatpush.msra.mxu0 0.0
        %450 = vmatpush.msra.mxu0 0.0
        %451 = vmatpush.msra.mxu0 0.0
        %452 = vmatpush.msra.mxu0 0.0
        %453 = vmatpush.msra.mxu0 0.0
        %454 = vmatpush.msra.mxu0 0.0
        %455 = vmatpush.msra.mxu0 0.0
        %456 = vmatpush.msra.mxu0 0.0
        %457 = vmatpush.msra.mxu0 0.0
        %458 = vmatpush.msra.mxu0 0.0
        %459 = vmatpush.msra.mxu0 0.0
        %460 = vmatpush.msra.mxu0 0.0
        %461 = vmatpush.msra.mxu0 %v442
        %462 = vmatmul.f32.gmra.mxu0 %v440
        %v463 = vpop.f32.mrf.mxu0
        %v464 = vadd.f32 0.0, %v463
        %465 = vdwg.mxu0
        %466 = vmatpush.msra.mxu0 0.0
        %467 = vmatpush.msra.mxu0 0.0
        %468 = vmatpush.msra.mxu0 0.0
        %469 = vmatpush.msra.mxu0 0.0
        %470 = vmatpush.msra.mxu0 0.0
        %471 = vmatpush.msra.mxu0 0.0
        %472 = vmatpush.msra.mxu0 0.0
        %473 = vmatpush.msra.mxu0 0.0
        %474 = vmatpush.msra.mxu0 0.0
        %475 = vmatpush.msra.mxu0 0.0
        %476 = vmatpush.msra.mxu0 0.0
        %477 = vmatpush.msra.mxu0 0.0
        %478 = vmatpush.msra.mxu0 0.0
        %479 = vmatpush.msra.mxu0 0.0
        %480 = vmatpush.msra.mxu0 0.0
        %481 = vmatpush.msra.mxu0 %v444
        %482 = vmatmul.f32.gmra.mxu0 %v440
        %v483 = vpop.f32.mrf.mxu0
        %v484 = vadd.f32 0.0, %v483
        %485 = vdwg.mxu0
        %v486 = vadd.f32 %v424, %v464
        %v487 = vadd.f32 %v425, %v484
        %s488 = scalar_lea.vmem %s1, 32
        %v489 = vld [vmem:[%s488] sm:$0xff]
        %v490 = vld [vmem:[%s250] sm:$0xff]
        %492 = vst [vmem:[#allocation1] ss:$2 sm:$0xff] %v490
        %v493 = vld.sshfl [vmem:[#allocation1] sm:$0xff pattern:$0x75316420]
        %v494 = vld.sshfl [vmem:[#allocation1 + $0x8] sm:$0xff pattern:$0x75316420]
        %495 = vrot.lane.b32.xlu0 %v493, 109
        %v496 = vpop.permute.xlu0 %495
        %497 = vrot.lane.b32.xlu0 %v494, 109
        %v498 = vpop.permute.xlu0 %497
        %vm499 = vcmask 891904
        %v500 = vsel %vm499, %v496, %v498
        %v502 = vsel %vm265, %v489, 0
        %v504 = vsel %vm269, %v500, 0
        %v506 = vsel %vm269, %v498, 0
        %508 = vmatpush.msra.mxu0 0.0
        %509 = vmatpush.msra.mxu0 0.0
        %510 = vmatpush.msra.mxu0 0.0
        %511 = vmatpush.msra.mxu0 0.0
        %512 = vmatpush.msra.mxu0 0.0
        %513 = vmatpush.msra.mxu0 0.0
        %514 = vmatpush.msra.mxu0 0.0
        %515 = vmatpush.msra.mxu0 0.0
        %516 = vmatpush.msra.mxu0 0.0
        %517 = vmatpush.msra.mxu0 0.0
        %518 = vmatpush.msra.mxu0 0.0
        %519 = vmatpush.msra.mxu0 0.0
        %520 = vmatpush.msra.mxu0 0.0
        %521 = vmatpush.msra.mxu0 0.0
        %522 = vmatpush.msra.mxu0 0.0
        %523 = vmatpush.msra.mxu0 %v504
        %524 = vmatmul.f32.gmra.mxu0 %v502
        %v525 = vpop.f32.mrf.mxu0
        %v526 = vadd.f32 0.0, %v525
        %527 = vdwg.mxu0
        %528 = vmatpush.msra.mxu0 0.0
        %529 = vmatpush.msra.mxu0 0.0
        %530 = vmatpush.msra.mxu0 0.0
        %531 = vmatpush.msra.mxu0 0.0
        %532 = vmatpush.msra.mxu0 0.0
        %533 = vmatpush.msra.mxu0 0.0
        %534 = vmatpush.msra.mxu0 0.0
        %535 = vmatpush.msra.mxu0 0.0
        %536 = vmatpush.msra.mxu0 0.0
        %537 = vmatpush.msra.mxu0 0.0
        %538 = vmatpush.msra.mxu0 0.0
        %539 = vmatpush.msra.mxu0 0.0
        %540 = vmatpush.msra.mxu0 0.0
        %541 = vmatpush.msra.mxu0 0.0
        %542 = vmatpush.msra.mxu0 0.0
        %543 = vmatpush.msra.mxu0 %v506
        %544 = vmatmul.f32.gmra.mxu0 %v502
        %v545 = vpop.f32.mrf.mxu0
        %v546 = vadd.f32 0.0, %v545
        %547 = vdwg.mxu0
        %v548 = vadd.f32 %v486, %v526
        %v549 = vadd.f32 %v487, %v546
        %s550 = scalar_lea.vmem %s1, 40
        %v551 = vld [vmem:[%s550] sm:$0xff]
        %v552 = vld [vmem:[%s250] sm:$0xff]
        %554 = vst [vmem:[#allocation1] ss:$2 sm:$0xff] %v552
        %v555 = vld.sshfl [vmem:[#allocation1] sm:$0xff pattern:$0x75316420]
        %v556 = vld.sshfl [vmem:[#allocation1 + $0x8] sm:$0xff pattern:$0x75316420]
        %557 = vrot.lane.b32.xlu0 %v555, 108
        %v558 = vpop.permute.xlu0 %557
        %559 = vrot.lane.b32.xlu0 %v556, 108
        %v560 = vpop.permute.xlu0 %559
        %vm561 = vcmask 883712
        %v562 = vsel %vm561, %v558, %v560
        %v564 = vsel %vm265, %v551, 0
        %v566 = vsel %vm269, %v562, 0
        %v568 = vsel %vm269, %v560, 0
        %570 = vmatpush.msra.mxu0 0.0
        %571 = vmatpush.msra.mxu0 0.0
        %572 = vmatpush.msra.mxu0 0.0
        %573 = vmatpush.msra.mxu0 0.0
        %574 = vmatpush.msra.mxu0 0.0
        %575 = vmatpush.msra.mxu0 0.0
        %576 = vmatpush.msra.mxu0 0.0
        %577 = vmatpush.msra.mxu0 0.0
        %578 = vmatpush.msra.mxu0 0.0
        %579 = vmatpush.msra.mxu0 0.0
        %580 = vmatpush.msra.mxu0 0.0
        %581 = vmatpush.msra.mxu0 0.0
        %582 = vmatpush.msra.mxu0 0.0
        %583 = vmatpush.msra.mxu0 0.0
        %584 = vmatpush.msra.mxu0 0.0
        %585 = vmatpush.msra.mxu0 %v566
        %586 = vmatmul.f32.gmra.mxu0 %v564
        %v587 = vpop.f32.mrf.mxu0
        %v588 = vadd.f32 0.0, %v587
        %589 = vdwg.mxu0
        %590 = vmatpush.msra.mxu0 0.0
        %591 = vmatpush.msra.mxu0 0.0
        %592 = vmatpush.msra.mxu0 0.0
        %593 = vmatpush.msra.mxu0 0.0
        %594 = vmatpush.msra.mxu0 0.0
        %595 = vmatpush.msra.mxu0 0.0
        %596 = vmatpush.msra.mxu0 0.0
        %597 = vmatpush.msra.mxu0 0.0
        %598 = vmatpush.msra.mxu0 0.0
        %599 = vmatpush.msra.mxu0 0.0
        %600 = vmatpush.msra.mxu0 0.0
        %601 = vmatpush.msra.mxu0 0.0
        %602 = vmatpush.msra.mxu0 0.0
        %603 = vmatpush.msra.mxu0 0.0
        %604 = vmatpush.msra.mxu0 0.0
        %605 = vmatpush.msra.mxu0 %v568
        %606 = vmatmul.f32.gmra.mxu0 %v564
        %v607 = vpop.f32.mrf.mxu0
        %v608 = vadd.f32 0.0, %v607
        %609 = vdwg.mxu0
        %v610 = vadd.f32 %v548, %v588
        %v611 = vadd.f32 %v549, %v608
        %s612 = scalar_lea.vmem %s1, 48
        %v613 = vld [vmem:[%s612] sm:$0xff]
        %v614 = vld [vmem:[%s250] sm:$0xff]
        %616 = vst [vmem:[#allocation1] ss:$2 sm:$0xff] %v614
        %v617 = vld.sshfl [vmem:[#allocation1] sm:$0xff pattern:$0x75316420]
        %v618 = vld.sshfl [vmem:[#allocation1 + $0x8] sm:$0xff pattern:$0x75316420]
        %619 = vrot.lane.b32.xlu0 %v617, 92
        %v620 = vpop.permute.xlu0 %619
        %621 = vrot.lane.b32.xlu0 %v618, 92
        %v622 = vpop.permute.xlu0 %621
        %vm623 = vcmask 752640
        %v624 = vsel %vm623, %v620, %v622
        %v626 = vsel %vm265, %v613, 0
        %v628 = vsel %vm269, %v624, 0
        %v630 = vsel %vm269, %v622, 0
        %632 = vmatpush.msra.mxu0 0.0
        %633 = vmatpush.msra.mxu0 0.0
        %634 = vmatpush.msra.mxu0 0.0
        %635 = vmatpush.msra.mxu0 0.0
        %636 = vmatpush.msra.mxu0 0.0
        %637 = vmatpush.msra.mxu0 0.0
        %638 = vmatpush.msra.mxu0 0.0
        %639 = vmatpush.msra.mxu0 0.0
        %640 = vmatpush.msra.mxu0 0.0
        %641 = vmatpush.msra.mxu0 0.0
        %642 = vmatpush.msra.mxu0 0.0
        %643 = vmatpush.msra.mxu0 0.0
        %644 = vmatpush.msra.mxu0 0.0
        %645 = vmatpush.msra.mxu0 0.0
        %646 = vmatpush.msra.mxu0 0.0
        %647 = vmatpush.msra.mxu0 %v628
        %648 = vmatmul.f32.gmra.mxu0 %v626
        %v649 = vpop.f32.mrf.mxu0
        %v650 = vadd.f32 0.0, %v649
        %651 = vdwg.mxu0
        %652 = vmatpush.msra.mxu0 0.0
        %653 = vmatpush.msra.mxu0 0.0
        %654 = vmatpush.msra.mxu0 0.0
        %655 = vmatpush.msra.mxu0 0.0
        %656 = vmatpush.msra.mxu0 0.0
        %657 = vmatpush.msra.mxu0 0.0
        %658 = vmatpush.msra.mxu0 0.0
        %659 = vmatpush.msra.mxu0 0.0
        %660 = vmatpush.msra.mxu0 0.0
        %661 = vmatpush.msra.mxu0 0.0
        %662 = vmatpush.msra.mxu0 0.0
        %663 = vmatpush.msra.mxu0 0.0
        %664 = vmatpush.msra.mxu0 0.0
        %665 = vmatpush.msra.mxu0 0.0
        %666 = vmatpush.msra.mxu0 0.0
        %667 = vmatpush.msra.mxu0 %v630
        %668 = vmatmul.f32.gmra.mxu0 %v626
        %v669 = vpop.f32.mrf.mxu0
        %v670 = vadd.f32 0.0, %v669
        %671 = vdwg.mxu0
        %v672 = vadd.f32 %v610, %v650
        %v673 = vadd.f32 %v611, %v670
        %s674 = scalar_lea.vmem %s1, 56
        %v675 = vld [vmem:[%s674] sm:$0xff]
        %v676 = vld [vmem:[%s250] sm:$0xff]
        %678 = vst [vmem:[#allocation1] ss:$2 sm:$0xff] %v676
        %v679 = vld.sshfl [vmem:[#allocation1] sm:$0xff pattern:$0x75316420]
        %v680 = vld.sshfl [vmem:[#allocation1 + $0x8] sm:$0xff pattern:$0x75316420]
        %681 = vrot.lane.b32.xlu0 %v679, 91
        %v682 = vpop.permute.xlu0 %681
        %683 = vrot.lane.b32.xlu0 %v680, 91
        %v684 = vpop.permute.xlu0 %683
        %vm685 = vcmask 744448
        %v686 = vsel %vm685, %v682, %v684
        %v688 = vsel %vm265, %v675, 0
        %v690 = vsel %vm269, %v686, 0
        %v692 = vsel %vm269, %v684, 0
        %694 = vmatpush.msra.mxu0 0.0
        %695 = vmatpush.msra.mxu0 0.0
        %696 = vmatpush.msra.mxu0 0.0
        %697 = vmatpush.msra.mxu0 0.0
        %698 = vmatpush.msra.mxu0 0.0
        %699 = vmatpush.msra.mxu0 0.0
        %700 = vmatpush.msra.mxu0 0.0
        %701 = vmatpush.msra.mxu0 0.0
        %702 = vmatpush.msra.mxu0 0.0
        %703 = vmatpush.msra.mxu0 0.0
        %704 = vmatpush.msra.mxu0 0.0
        %705 = vmatpush.msra.mxu0 0.0
        %706 = vmatpush.msra.mxu0 0.0
        %707 = vmatpush.msra.mxu0 0.0
        %708 = vmatpush.msra.mxu0 0.0
        %709 = vmatpush.msra.mxu0 %v690
        %710 = vmatmul.f32.gmra.mxu0 %v688
        %v711 = vpop.f32.mrf.mxu0
        %v712 = vadd.f32 0.0, %v711
        %713 = vdwg.mxu0
        %714 = vmatpush.msra.mxu0 0.0
        %715 = vmatpush.msra.mxu0 0.0
        %716 = vmatpush.msra.mxu0 0.0
        %717 = vmatpush.msra.mxu0 0.0
        %718 = vmatpush.msra.mxu0 0.0
        %719 = vmatpush.msra.mxu0 0.0
        %720 = vmatpush.msra.mxu0 0.0
        %721 = vmatpush.msra.mxu0 0.0
        %722 = vmatpush.msra.mxu0 0.0
        %723 = vmatpush.msra.mxu0 0.0
        %724 = vmatpush.msra.mxu0 0.0
        %725 = vmatpush.msra.mxu0 0.0
        %726 = vmatpush.msra.mxu0 0.0
        %727 = vmatpush.msra.mxu0 0.0
        %728 = vmatpush.msra.mxu0 0.0
        %729 = vmatpush.msra.mxu0 %v692
        %730 = vmatmul.f32.gmra.mxu0 %v688
        %v731 = vpop.f32.mrf.mxu0
        %v732 = vadd.f32 0.0, %v731
        %733 = vdwg.mxu0
        %v734 = vadd.f32 %v672, %v712
        %v735 = vadd.f32 %v673, %v732
        %s736 = scalar_lea.vmem %s1, 64
        %v737 = vld [vmem:[%s736] sm:$0xff]
        %v738 = vld [vmem:[%s250] sm:$0xff]
        %740 = vst [vmem:[#allocation1] ss:$2 sm:$0xff] %v738
        %v741 = vld.sshfl [vmem:[#allocation1] sm:$0xff pattern:$0x75316420]
        %v742 = vld.sshfl [vmem:[#allocation1 + $0x8] sm:$0xff pattern:$0x75316420]
        %743 = vrot.lane.b32.xlu0 %v741, 90
        %v744 = vpop.permute.xlu0 %743
        %745 = vrot.lane.b32.xlu0 %v742, 90
        %v746 = vpop.permute.xlu0 %745
        %vm747 = vcmask 736256
        %v748 = vsel %vm747, %v744, %v746
        %v750 = vsel %vm265, %v737, 0
        %v752 = vsel %vm269, %v748, 0
        %v754 = vsel %vm269, %v746, 0
        %756 = vmatpush.msra.mxu0 0.0
        %757 = vmatpush.msra.mxu0 0.0
        %758 = vmatpush.msra.mxu0 0.0
        %759 = vmatpush.msra.mxu0 0.0
        %760 = vmatpush.msra.mxu0 0.0
        %761 = vmatpush.msra.mxu0 0.0
        %762 = vmatpush.msra.mxu0 0.0
        %763 = vmatpush.msra.mxu0 0.0
        %764 = vmatpush.msra.mxu0 0.0
        %765 = vmatpush.msra.mxu0 0.0
        %766 = vmatpush.msra.mxu0 0.0
        %767 = vmatpush.msra.mxu0 0.0
        %768 = vmatpush.msra.mxu0 0.0
        %769 = vmatpush.msra.mxu0 0.0
        %770 = vmatpush.msra.mxu0 0.0
        %771 = vmatpush.msra.mxu0 %v752
        %772 = vmatmul.f32.gmra.mxu0 %v750
        %v773 = vpop.f32.mrf.mxu0
        %v774 = vadd.f32 0.0, %v773
        %775 = vdwg.mxu0
        %776 = vmatpush.msra.mxu0 0.0
        %777 = vmatpush.msra.mxu0 0.0
        %778 = vmatpush.msra.mxu0 0.0
        %779 = vmatpush.msra.mxu0 0.0
        %780 = vmatpush.msra.mxu0 0.0
        %781 = vmatpush.msra.mxu0 0.0
        %782 = vmatpush.msra.mxu0 0.0
        %783 = vmatpush.msra.mxu0 0.0
        %784 = vmatpush.msra.mxu0 0.0
        %785 = vmatpush.msra.mxu0 0.0
        %786 = vmatpush.msra.mxu0 0.0
        %787 = vmatpush.msra.mxu0 0.0
        %788 = vmatpush.msra.mxu0 0.0
        %789 = vmatpush.msra.mxu0 0.0
        %790 = vmatpush.msra.mxu0 0.0
        %791 = vmatpush.msra.mxu0 %v754
        %792 = vmatmul.f32.gmra.mxu0 %v750
        %v793 = vpop.f32.mrf.mxu0
        %v794 = vadd.f32 0.0, %v793
        %795 = vdwg.mxu0
        %v796 = vadd.f32 %v734, %v774
        %v797 = vadd.f32 %v735, %v794
        %v798 = vld [vmem:[%s2] sm:$0xff]
        %800 = vset.pattern.permute.xlu0 0
        %801 = vperm.xlu0 %800, %v798
        %v802 = vpop.permute.xlu0 %801
        %v804 = vadd.f32 %v796, %v802
        %v805 = vadd.f32 %v797, %v802
        %v806 = vmax.f32 %v804, 0.0
        %v807 = vmax.f32 %v805, 0.0
        %vm808 = vcmask 23552
        %809 = vst.msk [vmem:[#allocation2] sm:$0xff] %vm808, 0.0
        %812 = vrot.lane.b32.xlu0 %v806, 3
        %v813 = vpop.permute.xlu0 %812
        %814 = vrot.lane.b32.xlu0 %v807, 3
        %v815 = vpop.permute.xlu0 %814
        %v816 = vsel %vm808, %v813, %v815
        %vm819 = vcmask 1047576
        %820 = vst.msk [vmem:[#allocation2] sm:$0xff] %vm819, %v813
        %vm821 = vcmask 449536
        %822 = vst.msk [vmem:[#allocation2 + $0x8] sm:$0xff] %vm821, %v816
        %vm823 = vcmask 1047984
        %824 = vst.msk [vmem:[#allocation2 + $0x8] sm:$0xff] %vm823, 0.0
        %p825 = scmp.eq.s32.totalorder %s24, 0
        // Predicated region
        $region41: #{tpu_custom_call.1} parent=39 // pred_check
          %p826 = pneg %p825
        $region42: #{tpu_custom_call.1} parent=39 // pred_check_branch
          %828 = sbr.rel (%p826) target = $region44
        $region43: #{tpu_custom_call.1} parent=39 // pred_region
          %v829 = vld [vmem:[#allocation2] sm:$0xff]
          %831 = vrot.lane.b32.xlu0 %v829, 92
          %v832 = vpop.permute.xlu0 %831
          %vm834 = vcmask 154648
          %835 = vst.msk [vmem:[#allocation2] sm:$0xff] %vm834, %v832
        $region44: #{tpu_custom_call.1} parent=39 // pred_fallthru
          _
        %p836 = scmp.eq.s32.totalorder %s24, 1
        // Predicated region
        $region45: #{tpu_custom_call.1} parent=39 // pred_check
          %p837 = pneg %p836
        $region46: #{tpu_custom_call.1} parent=39 // pred_check_branch
          %839 = sbr.rel (%p837) target = $region48
        $region47: #{tpu_custom_call.1} parent=39 // pred_region
          %v840 = vld [vmem:[#allocation2 + $0x8] sm:$0xff]
          %842 = vrot.lane.b32.xlu0 %v840, 36
          %v843 = vpop.permute.xlu0 %842
          %vm845 = vcmask 433448
          %846 = vst.msk [vmem:[#allocation2 + $0x8] sm:$0xff] %vm845, %v843
        $region48: #{tpu_custom_call.1} parent=39 // pred_fallthru
          _
        %v847 = vlaneseq
        %v848 = vand.u32 %v847, 127
        %v849 = vadd.s32 %v848, 128
        %vm850 = vcmp.lt.s32.totalorder %v848, 0
        %v851 = vsub.s32 0, %v848
        %v852 = vsel %vm850, %v851, %v848
        %v853 = vand.u32 %v852, 65535
        %v854 = vshrl.u32 %v852, 16
        %v856 = vmul.u32 %v853, 14564
        %v857 = vmul.u32 %v853, 58254
        %v858 = vmul.u32 %v854, 14564
        %v859 = vmul.u32 %v854, 58254
        %v860 = vshll.u32 %v857, 16
        %v861 = vshrl.u32 %v857, 16
        %v862 = vshll.u32 %v858, 16
        %v863 = vshrl.u32 %v858, 16
        %vm864 = vc.u32 %v856, %v860
        %v865 = vsel %vm864, 1, 0
        %v866 = vadd.s32 %v856, %v860
        %v867 = vadd.s32 %v859, %v865
        %vm868 = vc.u32 %v866, %v862
        %v869 = vsel %vm868, 1, 0
        %v870 = vadd.s32 %v866, %v862
        %v871 = vadd.s32 %v867, %v869
        %v872 = vadd.s32 %v871, %v861
        %v873 = vadd.s32 %v872, %v863
        %v874 = vshrl.u32 %v873, 4
        %v875 = vmul.u32 %v874, 18
        %v876 = vsub.s32 %v852, %v875
        %v877 = vsub.s32 0, %v876
        %v878 = vsel %vm850, %v877, %v876
        %vm879 = vcmp.lt.s32.totalorder %v849, 0
        %v880 = vsub.s32 0, %v849
        %v881 = vsel %vm879, %v880, %v849
        %v882 = vand.u32 %v881, 65535
        %v883 = vshrl.u32 %v881, 16
        %v885 = vmul.u32 %v882, 14564
        %v886 = vmul.u32 %v882, 58254
        %v887 = vmul.u32 %v883, 14564
        %v888 = vmul.u32 %v883, 58254
        %v889 = vshll.u32 %v886, 16
        %v890 = vshrl.u32 %v886, 16
        %v891 = vshll.u32 %v887, 16
        %v892 = vshrl.u32 %v887, 16
        %vm893 = vc.u32 %v885, %v889
        %v894 = vsel %vm893, 1, 0
        %v895 = vadd.s32 %v885, %v889
        %v896 = vadd.s32 %v888, %v894
        %vm897 = vc.u32 %v895, %v891
        %v898 = vsel %vm897, 1, 0
        %v899 = vadd.s32 %v895, %v891
        %v900 = vadd.s32 %v896, %v898
        %v901 = vadd.s32 %v900, %v890
        %v902 = vadd.s32 %v901, %v892
        %v903 = vshrl.u32 %v902, 4
        %v904 = vmul.u32 %v903, 18
        %v905 = vsub.s32 %v881, %v904
        %v906 = vsub.s32 0, %v905
        %v907 = vsel %vm879, %v906, %v905
        %vm908 = vcmp.ne.s32.totalorder %v878, 0
        %vm909 = vcmp.ne.s32.totalorder %v907, 0
        %vm910 = vcmp.lt.s32.totalorder %v878, 0
        %vm911 = vcmp.lt.s32.totalorder %v907, 0
        %vm912 = vmand %vm910, %vm908
        %vm913 = vmand %vm911, %vm909
        %v914 = vadd.s32 %v878, 18
        %v915 = vadd.s32 %v907, 18
        %v916 = vsel %vm912, %v914, %v878
        %v917 = vsel %vm913, %v915, %v907
        %v918 = vld [vmem:[#allocation2] sm:$0xff]
        %v919 = vld [vmem:[#allocation2 + $0x8] sm:$0xff]
        %vm920 = vcmp.eq.s32.totalorder %v916, 0
        %vm921 = vcmp.eq.s32.totalorder %v917, 0
        %vm922 = vcmp.eq.s32.totalorder %v916, 17
        %vm923 = vcmp.eq.s32.totalorder %v917, 17
        %v924 = vsel %vm922, 1, 0
        %v925 = vsel %vm923, 1, 0
        %vm926 = vcmp.eq.s32.totalorder %v924, 1
        %vm927 = vcmp.eq.s32.totalorder %v925, 1
        %930 = vrot.lane.b32.xlu0 %v918, 126
        %v931 = vpop.permute.xlu0 %930
        %932 = vrot.lane.b32.xlu0 %v919, 126
        %v933 = vpop.permute.xlu0 %932
        %v934 = vsel %vm375, %v931, %v933
        %v937 = vsel %vm926, %v918, %v934
        %v938 = vsel %vm927, %v919, %v933
        %v939 = vsel %vm920, 1, 0
        %v940 = vsel %vm921, 1, 0
        %vm941 = vcmp.eq.s32.totalorder %v939, 1
        %vm942 = vcmp.eq.s32.totalorder %v940, 1
        %943 = vrot.lane.b32.xlu0 %v918, 124
        %v944 = vpop.permute.xlu0 %943
        %945 = vrot.lane.b32.xlu0 %v919, 124
        %v946 = vpop.permute.xlu0 %945
        %vm947 = vcmask 1014784
        %v948 = vsel %vm947, %v944, %v946
        %v951 = vsel %vm941, %v948, %v937
        %v952 = vsel %vm942, %v946, %v938
        %955 = vrot.lane.b32.xlu0 %v951, 2
        %v956 = vpop.permute.xlu0 %955
        %957 = vrot.lane.b32.xlu0 %v952, 2
        %v958 = vpop.permute.xlu0 %957
        %vm959 = vcmask 15360
        %v960 = vsel %vm959, %v956, %v958
        %vm963 = vcmask 1047568
        %964 = vst.msk [vmem:[#allocation2] sm:$0xff] %vm963, %v956
        %vm965 = vcmask 441344
        %966 = vst.msk [vmem:[#allocation2 + $0x8] sm:$0xff] %vm965, %v960
        %v967 = vld [vmem:[%s3] sm:$0xff]
        %v968 = vld [vmem:[#allocation2] sm:$0xff]
        %v969 = vld [vmem:[#allocation2 + $0x8] sm:$0xff]
        %s970 = scalar_lea.vmem %s3, 8
        %v971 = vld [vmem:[%s970] sm:$0xff]
        %974 = vrot.lane.b32.xlu0 %v968, 125
        %v975 = vpop.permute.xlu0 %974
        %976 = vrot.lane.b32.xlu0 %v969, 125
        %v977 = vpop.permute.xlu0 %976
        %vm978 = vcmask 1022976
        %v979 = vsel %vm978, %v975, %v977
        %vm982 = vcmask 64512
        %v984 = vsel %vm982, %v971, 0
        %986 = vmatpush.msra.mxu0 0.0
        %987 = vmatpush.msra.mxu0 0.0
        %988 = vmatpush.msra.mxu0 0.0
        %989 = vmatpush.msra.mxu0 0.0
        %990 = vmatpush.msra.mxu0 0.0
        %991 = vmatpush.msra.mxu0 0.0
        %992 = vmatpush.msra.mxu0 0.0
        %993 = vmatpush.msra.mxu0 0.0
        %994 = vmatpush.msra.mxu0 0.0
        %995 = vmatpush.msra.mxu0 0.0
        %996 = vmatpush.msra.mxu0 0.0
        %997 = vmatpush.msra.mxu0 0.0
        %998 = vmatpush.msra.mxu0 0.0
        %999 = vmatpush.msra.mxu0 0.0
        %1000 = vmatpush.msra.mxu0 0.0
        %1001 = vmatpush.msra.mxu0 %v979
        %1002 = vmatmul.f32.gmra.mxu0 %v984
        %v1003 = vpop.f32.mrf.mxu0
        %v1004 = vadd.f32 0.0, %v1003
        %1005 = vdwg.mxu0
        %1006 = vmatpush.msra.mxu0 0.0
        %1007 = vmatpush.msra.mxu0 0.0
        %1008 = vmatpush.msra.mxu0 0.0
        %1009 = vmatpush.msra.mxu0 0.0
        %1010 = vmatpush.msra.mxu0 0.0
        %1011 = vmatpush.msra.mxu0 0.0
        %1012 = vmatpush.msra.mxu0 0.0
        %1013 = vmatpush.msra.mxu0 0.0
        %1014 = vmatpush.msra.mxu0 0.0
        %1015 = vmatpush.msra.mxu0 0.0
        %1016 = vmatpush.msra.mxu0 0.0
        %1017 = vmatpush.msra.mxu0 0.0
        %1018 = vmatpush.msra.mxu0 0.0
        %1019 = vmatpush.msra.mxu0 0.0
        %1020 = vmatpush.msra.mxu0 0.0
        %1021 = vmatpush.msra.mxu0 %v977
        %1022 = vmatmul.f32.gmra.mxu0 %v984
        %v1023 = vpop.f32.mrf.mxu0
        %v1024 = vadd.f32 0.0, %v1023
        %1025 = vdwg.mxu0
        %1026 = vrot.lane.b32.xlu0 %v968, 126
        %v1027 = vpop.permute.xlu0 %1026
        %1028 = vrot.lane.b32.xlu0 %v969, 126
        %v1029 = vpop.permute.xlu0 %1028
        %v1030 = vsel %vm375, %v1027, %v1029
        %v1034 = vsel %vm982, %v967, 0
        %1036 = vmatpush.msra.mxu0 0.0
        %1037 = vmatpush.msra.mxu0 0.0
        %1038 = vmatpush.msra.mxu0 0.0
        %1039 = vmatpush.msra.mxu0 0.0
        %1040 = vmatpush.msra.mxu0 0.0
        %1041 = vmatpush.msra.mxu0 0.0
        %1042 = vmatpush.msra.mxu0 0.0
        %1043 = vmatpush.msra.mxu0 0.0
        %1044 = vmatpush.msra.mxu0 0.0
        %1045 = vmatpush.msra.mxu0 0.0
        %1046 = vmatpush.msra.mxu0 0.0
        %1047 = vmatpush.msra.mxu0 0.0
        %1048 = vmatpush.msra.mxu0 0.0
        %1049 = vmatpush.msra.mxu0 0.0
        %1050 = vmatpush.msra.mxu0 0.0
        %1051 = vmatpush.msra.mxu0 %v1030
        %1052 = vmatmul.f32.gmra.mxu0 %v1034
        %v1053 = vpop.f32.mrf.mxu0
        %v1054 = vadd.f32 %v1004, %v1053
        %1055 = vdwg.mxu0
        %1056 = vmatpush.msra.mxu0 0.0
        %1057 = vmatpush.msra.mxu0 0.0
        %1058 = vmatpush.msra.mxu0 0.0
        %1059 = vmatpush.msra.mxu0 0.0
        %1060 = vmatpush.msra.mxu0 0.0
        %1061 = vmatpush.msra.mxu0 0.0
        %1062 = vmatpush.msra.mxu0 0.0
        %1063 = vmatpush.msra.mxu0 0.0
        %1064 = vmatpush.msra.mxu0 0.0
        %1065 = vmatpush.msra.mxu0 0.0
        %1066 = vmatpush.msra.mxu0 0.0
        %1067 = vmatpush.msra.mxu0 0.0
        %1068 = vmatpush.msra.mxu0 0.0
        %1069 = vmatpush.msra.mxu0 0.0
        %1070 = vmatpush.msra.mxu0 0.0
        %1071 = vmatpush.msra.mxu0 %v1029
        %1072 = vmatmul.f32.gmra.mxu0 %v1034
        %v1073 = vpop.f32.mrf.mxu0
        %v1074 = vadd.f32 %v1024, %v1073
        %1075 = vdwg.mxu0
        %s1076 = scalar_lea.vmem %s3, 16
        %v1077 = vld [vmem:[%s1076] sm:$0xff]
        %1078 = vrot.lane.b32.xlu0 %v968, 124
        %v1079 = vpop.permute.xlu0 %1078
        %1080 = vrot.lane.b32.xlu0 %v969, 124
        %v1081 = vpop.permute.xlu0 %1080
        %v1082 = vsel %vm947, %v1079, %v1081
        %v1086 = vsel %vm982, %v1077, 0
        %1088 = vmatpush.msra.mxu0 0.0
        %1089 = vmatpush.msra.mxu0 0.0
        %1090 = vmatpush.msra.mxu0 0.0
        %1091 = vmatpush.msra.mxu0 0.0
        %1092 = vmatpush.msra.mxu0 0.0
        %1093 = vmatpush.msra.mxu0 0.0
        %1094 = vmatpush.msra.mxu0 0.0
        %1095 = vmatpush.msra.mxu0 0.0
        %1096 = vmatpush.msra.mxu0 0.0
        %1097 = vmatpush.msra.mxu0 0.0
        %1098 = vmatpush.msra.mxu0 0.0
        %1099 = vmatpush.msra.mxu0 0.0
        %1100 = vmatpush.msra.mxu0 0.0
        %1101 = vmatpush.msra.mxu0 0.0
        %1102 = vmatpush.msra.mxu0 0.0
        %1103 = vmatpush.msra.mxu0 %v1082
        %1104 = vmatmul.f32.gmra.mxu0 %v1086
        %v1105 = vpop.f32.mrf.mxu0
        %v1106 = vadd.f32 0.0, %v1105
        %1107 = vdwg.mxu0
        %1108 = vmatpush.msra.mxu0 0.0
        %1109 = vmatpush.msra.mxu0 0.0
        %1110 = vmatpush.msra.mxu0 0.0
        %1111 = vmatpush.msra.mxu0 0.0
        %1112 = vmatpush.msra.mxu0 0.0
        %1113 = vmatpush.msra.mxu0 0.0
        %1114 = vmatpush.msra.mxu0 0.0
        %1115 = vmatpush.msra.mxu0 0.0
        %1116 = vmatpush.msra.mxu0 0.0
        %1117 = vmatpush.msra.mxu0 0.0
        %1118 = vmatpush.msra.mxu0 0.0
        %1119 = vmatpush.msra.mxu0 0.0
        %1120 = vmatpush.msra.mxu0 0.0
        %1121 = vmatpush.msra.mxu0 0.0
        %1122 = vmatpush.msra.mxu0 0.0
        %1123 = vmatpush.msra.mxu0 %v1081
        %1124 = vmatmul.f32.gmra.mxu0 %v1086
        %v1125 = vpop.f32.mrf.mxu0
        %v1126 = vadd.f32 0.0, %v1125
        %1127 = vdwg.mxu0
        %v1128 = vadd.f32 %v1054, %v1106
        %v1129 = vadd.f32 %v1074, %v1126
        %s1130 = scalar_lea.vmem %s3, 24
        %v1131 = vld [vmem:[%s1130] sm:$0xff]
        %1132 = vrot.lane.b32.xlu0 %v968, 108
        %v1133 = vpop.permute.xlu0 %1132
        %1134 = vrot.lane.b32.xlu0 %v969, 108
        %v1135 = vpop.permute.xlu0 %1134
        %v1136 = vsel %vm561, %v1133, %v1135
        %v1140 = vsel %vm982, %v1131, 0
        %1142 = vmatpush.msra.mxu0 0.0
        %1143 = vmatpush.msra.mxu0 0.0
        %1144 = vmatpush.msra.mxu0 0.0
        %1145 = vmatpush.msra.mxu0 0.0
        %1146 = vmatpush.msra.mxu0 0.0
        %1147 = vmatpush.msra.mxu0 0.0
        %1148 = vmatpush.msra.mxu0 0.0
        %1149 = vmatpush.msra.mxu0 0.0
        %1150 = vmatpush.msra.mxu0 0.0
        %1151 = vmatpush.msra.mxu0 0.0
        %1152 = vmatpush.msra.mxu0 0.0
        %1153 = vmatpush.msra.mxu0 0.0
        %1154 = vmatpush.msra.mxu0 0.0
        %1155 = vmatpush.msra.mxu0 0.0
        %1156 = vmatpush.msra.mxu0 0.0
        %1157 = vmatpush.msra.mxu0 %v1136
        %1158 = vmatmul.f32.gmra.mxu0 %v1140
        %v1159 = vpop.f32.mrf.mxu0
        %v1160 = vadd.f32 0.0, %v1159
        %1161 = vdwg.mxu0
        %1162 = vmatpush.msra.mxu0 0.0
        %1163 = vmatpush.msra.mxu0 0.0
        %1164 = vmatpush.msra.mxu0 0.0
        %1165 = vmatpush.msra.mxu0 0.0
        %1166 = vmatpush.msra.mxu0 0.0
        %1167 = vmatpush.msra.mxu0 0.0
        %1168 = vmatpush.msra.mxu0 0.0
        %1169 = vmatpush.msra.mxu0 0.0
        %1170 = vmatpush.msra.mxu0 0.0
        %1171 = vmatpush.msra.mxu0 0.0
        %1172 = vmatpush.msra.mxu0 0.0
        %1173 = vmatpush.msra.mxu0 0.0
        %1174 = vmatpush.msra.mxu0 0.0
        %1175 = vmatpush.msra.mxu0 0.0
        %1176 = vmatpush.msra.mxu0 0.0
        %1177 = vmatpush.msra.mxu0 %v1135
        %1178 = vmatmul.f32.gmra.mxu0 %v1140
        %v1179 = vpop.f32.mrf.mxu0
        %v1180 = vadd.f32 0.0, %v1179
        %1181 = vdwg.mxu0
        %v1182 = vadd.f32 %v1128, %v1160
        %v1183 = vadd.f32 %v1129, %v1180
        %s1184 = scalar_lea.vmem %s3, 32
        %v1185 = vld [vmem:[%s1184] sm:$0xff]
        %1186 = vrot.lane.b32.xlu0 %v968, 107
        %v1187 = vpop.permute.xlu0 %1186
        %1188 = vrot.lane.b32.xlu0 %v969, 107
        %v1189 = vpop.permute.xlu0 %1188
        %vm1190 = vcmask 875520
        %v1191 = vsel %vm1190, %v1187, %v1189
        %v1195 = vsel %vm982, %v1185, 0
        %1197 = vmatpush.msra.mxu0 0.0
        %1198 = vmatpush.msra.mxu0 0.0
        %1199 = vmatpush.msra.mxu0 0.0
        %1200 = vmatpush.msra.mxu0 0.0
        %1201 = vmatpush.msra.mxu0 0.0
        %1202 = vmatpush.msra.mxu0 0.0
        %1203 = vmatpush.msra.mxu0 0.0
        %1204 = vmatpush.msra.mxu0 0.0
        %1205 = vmatpush.msra.mxu0 0.0
        %1206 = vmatpush.msra.mxu0 0.0
        %1207 = vmatpush.msra.mxu0 0.0
        %1208 = vmatpush.msra.mxu0 0.0
        %1209 = vmatpush.msra.mxu0 0.0
        %1210 = vmatpush.msra.mxu0 0.0
        %1211 = vmatpush.msra.mxu0 0.0
        %1212 = vmatpush.msra.mxu0 %v1191
        %1213 = vmatmul.f32.gmra.mxu0 %v1195
        %v1214 = vpop.f32.mrf.mxu0
        %v1215 = vadd.f32 0.0, %v1214
        %1216 = vdwg.mxu0
        %1217 = vmatpush.msra.mxu0 0.0
        %1218 = vmatpush.msra.mxu0 0.0
        %1219 = vmatpush.msra.mxu0 0.0
        %1220 = vmatpush.msra.mxu0 0.0
        %1221 = vmatpush.msra.mxu0 0.0
        %1222 = vmatpush.msra.mxu0 0.0
        %1223 = vmatpush.msra.mxu0 0.0
        %1224 = vmatpush.msra.mxu0 0.0
        %1225 = vmatpush.msra.mxu0 0.0
        %1226 = vmatpush.msra.mxu0 0.0
        %1227 = vmatpush.msra.mxu0 0.0
        %1228 = vmatpush.msra.mxu0 0.0
        %1229 = vmatpush.msra.mxu0 0.0
        %1230 = vmatpush.msra.mxu0 0.0
        %1231 = vmatpush.msra.mxu0 0.0
        %1232 = vmatpush.msra.mxu0 %v1189
        %1233 = vmatmul.f32.gmra.mxu0 %v1195
        %v1234 = vpop.f32.mrf.mxu0
        %v1235 = vadd.f32 0.0, %v1234
        %1236 = vdwg.mxu0
        %v1237 = vadd.f32 %v1182, %v1215
        %v1238 = vadd.f32 %v1183, %v1235
        %s1239 = scalar_lea.vmem %s3, 40
        %v1240 = vld [vmem:[%s1239] sm:$0xff]
        %1241 = vrot.lane.b32.xlu0 %v968, 106
        %v1242 = vpop.permute.xlu0 %1241
        %1243 = vrot.lane.b32.xlu0 %v969, 106
        %v1244 = vpop.permute.xlu0 %1243
        %vm1245 = vcmask 867328
        %v1246 = vsel %vm1245, %v1242, %v1244
        %v1250 = vsel %vm982, %v1240, 0
        %1252 = vmatpush.msra.mxu0 0.0
        %1253 = vmatpush.msra.mxu0 0.0
        %1254 = vmatpush.msra.mxu0 0.0
        %1255 = vmatpush.msra.mxu0 0.0
        %1256 = vmatpush.msra.mxu0 0.0
        %1257 = vmatpush.msra.mxu0 0.0
        %1258 = vmatpush.msra.mxu0 0.0
        %1259 = vmatpush.msra.mxu0 0.0
        %1260 = vmatpush.msra.mxu0 0.0
        %1261 = vmatpush.msra.mxu0 0.0
        %1262 = vmatpush.msra.mxu0 0.0
        %1263 = vmatpush.msra.mxu0 0.0
        %1264 = vmatpush.msra.mxu0 0.0
        %1265 = vmatpush.msra.mxu0 0.0
        %1266 = vmatpush.msra.mxu0 0.0
        %1267 = vmatpush.msra.mxu0 %v1246
        %1268 = vmatmul.f32.gmra.mxu0 %v1250
        %v1269 = vpop.f32.mrf.mxu0
        %v1270 = vadd.f32 0.0, %v1269
        %1271 = vdwg.mxu0
        %1272 = vmatpush.msra.mxu0 0.0
        %1273 = vmatpush.msra.mxu0 0.0
        %1274 = vmatpush.msra.mxu0 0.0
        %1275 = vmatpush.msra.mxu0 0.0
        %1276 = vmatpush.msra.mxu0 0.0
        %1277 = vmatpush.msra.mxu0 0.0
        %1278 = vmatpush.msra.mxu0 0.0
        %1279 = vmatpush.msra.mxu0 0.0
        %1280 = vmatpush.msra.mxu0 0.0
        %1281 = vmatpush.msra.mxu0 0.0
        %1282 = vmatpush.msra.mxu0 0.0
        %1283 = vmatpush.msra.mxu0 0.0
        %1284 = vmatpush.msra.mxu0 0.0
        %1285 = vmatpush.msra.mxu0 0.0
        %1286 = vmatpush.msra.mxu0 0.0
        %1287 = vmatpush.msra.mxu0 %v1244
        %1288 = vmatmul.f32.gmra.mxu0 %v1250
        %v1289 = vpop.f32.mrf.mxu0
        %v1290 = vadd.f32 0.0, %v1289
        %1291 = vdwg.mxu0
        %v1292 = vadd.f32 %v1237, %v1270
        %v1293 = vadd.f32 %v1238, %v1290
        %s1294 = scalar_lea.vmem %s3, 48
        %v1295 = vld [vmem:[%s1294] sm:$0xff]
        %1296 = vrot.lane.b32.xlu0 %v968, 90
        %v1297 = vpop.permute.xlu0 %1296
        %1298 = vrot.lane.b32.xlu0 %v969, 90
        %v1299 = vpop.permute.xlu0 %1298
        %v1300 = vsel %vm747, %v1297, %v1299
        %v1304 = vsel %vm982, %v1295, 0
        %1306 = vmatpush.msra.mxu0 0.0
        %1307 = vmatpush.msra.mxu0 0.0
        %1308 = vmatpush.msra.mxu0 0.0
        %1309 = vmatpush.msra.mxu0 0.0
        %1310 = vmatpush.msra.mxu0 0.0
        %1311 = vmatpush.msra.mxu0 0.0
        %1312 = vmatpush.msra.mxu0 0.0
        %1313 = vmatpush.msra.mxu0 0.0
        %1314 = vmatpush.msra.mxu0 0.0
        %1315 = vmatpush.msra.mxu0 0.0
        %1316 = vmatpush.msra.mxu0 0.0
        %1317 = vmatpush.msra.mxu0 0.0
        %1318 = vmatpush.msra.mxu0 0.0
        %1319 = vmatpush.msra.mxu0 0.0
        %1320 = vmatpush.msra.mxu0 0.0
        %1321 = vmatpush.msra.mxu0 %v1300
        %1322 = vmatmul.f32.gmra.mxu0 %v1304
        %v1323 = vpop.f32.mrf.mxu0
        %v1324 = vadd.f32 0.0, %v1323
        %1325 = vdwg.mxu0
        %1326 = vmatpush.msra.mxu0 0.0
        %1327 = vmatpush.msra.mxu0 0.0
        %1328 = vmatpush.msra.mxu0 0.0
        %1329 = vmatpush.msra.mxu0 0.0
        %1330 = vmatpush.msra.mxu0 0.0
        %1331 = vmatpush.msra.mxu0 0.0
        %1332 = vmatpush.msra.mxu0 0.0
        %1333 = vmatpush.msra.mxu0 0.0
        %1334 = vmatpush.msra.mxu0 0.0
        %1335 = vmatpush.msra.mxu0 0.0
        %1336 = vmatpush.msra.mxu0 0.0
        %1337 = vmatpush.msra.mxu0 0.0
        %1338 = vmatpush.msra.mxu0 0.0
        %1339 = vmatpush.msra.mxu0 0.0
        %1340 = vmatpush.msra.mxu0 0.0
        %1341 = vmatpush.msra.mxu0 %v1299
        %1342 = vmatmul.f32.gmra.mxu0 %v1304
        %v1343 = vpop.f32.mrf.mxu0
        %v1344 = vadd.f32 0.0, %v1343
        %1345 = vdwg.mxu0
        %v1346 = vadd.f32 %v1292, %v1324
        %v1347 = vadd.f32 %v1293, %v1344
        %s1348 = scalar_lea.vmem %s3, 56
        %v1349 = vld [vmem:[%s1348] sm:$0xff]
        %1350 = vrot.lane.b32.xlu0 %v968, 89
        %v1351 = vpop.permute.xlu0 %1350
        %1352 = vrot.lane.b32.xlu0 %v969, 89
        %v1353 = vpop.permute.xlu0 %1352
        %vm1354 = vcmask 728064
        %v1355 = vsel %vm1354, %v1351, %v1353
        %v1359 = vsel %vm982, %v1349, 0
        %1361 = vmatpush.msra.mxu0 0.0
        %1362 = vmatpush.msra.mxu0 0.0
        %1363 = vmatpush.msra.mxu0 0.0
        %1364 = vmatpush.msra.mxu0 0.0
        %1365 = vmatpush.msra.mxu0 0.0
        %1366 = vmatpush.msra.mxu0 0.0
        %1367 = vmatpush.msra.mxu0 0.0
        %1368 = vmatpush.msra.mxu0 0.0
        %1369 = vmatpush.msra.mxu0 0.0
        %1370 = vmatpush.msra.mxu0 0.0
        %1371 = vmatpush.msra.mxu0 0.0
        %1372 = vmatpush.msra.mxu0 0.0
        %1373 = vmatpush.msra.mxu0 0.0
        %1374 = vmatpush.msra.mxu0 0.0
        %1375 = vmatpush.msra.mxu0 0.0
        %1376 = vmatpush.msra.mxu0 %v1355
        %1377 = vmatmul.f32.gmra.mxu0 %v1359
        %v1378 = vpop.f32.mrf.mxu0
        %v1379 = vadd.f32 0.0, %v1378
        %1380 = vdwg.mxu0
        %1381 = vmatpush.msra.mxu0 0.0
        %1382 = vmatpush.msra.mxu0 0.0
        %1383 = vmatpush.msra.mxu0 0.0
        %1384 = vmatpush.msra.mxu0 0.0
        %1385 = vmatpush.msra.mxu0 0.0
        %1386 = vmatpush.msra.mxu0 0.0
        %1387 = vmatpush.msra.mxu0 0.0
        %1388 = vmatpush.msra.mxu0 0.0
        %1389 = vmatpush.msra.mxu0 0.0
        %1390 = vmatpush.msra.mxu0 0.0
        %1391 = vmatpush.msra.mxu0 0.0
        %1392 = vmatpush.msra.mxu0 0.0
        %1393 = vmatpush.msra.mxu0 0.0
        %1394 = vmatpush.msra.mxu0 0.0
        %1395 = vmatpush.msra.mxu0 0.0
        %1396 = vmatpush.msra.mxu0 %v1353
        %1397 = vmatmul.f32.gmra.mxu0 %v1359
        %v1398 = vpop.f32.mrf.mxu0
        %v1399 = vadd.f32 0.0, %v1398
        %1400 = vdwg.mxu0
        %v1401 = vadd.f32 %v1346, %v1379
        %v1402 = vadd.f32 %v1347, %v1399
        %s1403 = scalar_lea.vmem %s3, 64
        %v1404 = vld [vmem:[%s1403] sm:$0xff]
        %1405 = vrot.lane.b32.xlu0 %v968, 88
        %v1406 = vpop.permute.xlu0 %1405
        %1407 = vrot.lane.b32.xlu0 %v969, 88
        %v1408 = vpop.permute.xlu0 %1407
        %vm1409 = vcmask 719872
        %v1410 = vsel %vm1409, %v1406, %v1408
        %v1414 = vsel %vm982, %v1404, 0
        %1416 = vmatpush.msra.mxu0 0.0
        %1417 = vmatpush.msra.mxu0 0.0
        %1418 = vmatpush.msra.mxu0 0.0
        %1419 = vmatpush.msra.mxu0 0.0
        %1420 = vmatpush.msra.mxu0 0.0
        %1421 = vmatpush.msra.mxu0 0.0
        %1422 = vmatpush.msra.mxu0 0.0
        %1423 = vmatpush.msra.mxu0 0.0
        %1424 = vmatpush.msra.mxu0 0.0
        %1425 = vmatpush.msra.mxu0 0.0
        %1426 = vmatpush.msra.mxu0 0.0
        %1427 = vmatpush.msra.mxu0 0.0
        %1428 = vmatpush.msra.mxu0 0.0
        %1429 = vmatpush.msra.mxu0 0.0
        %1430 = vmatpush.msra.mxu0 0.0
        %1431 = vmatpush.msra.mxu0 %v1410
        %1432 = vmatmul.f32.gmra.mxu0 %v1414
        %v1433 = vpop.f32.mrf.mxu0
        %v1434 = vadd.f32 0.0, %v1433
        %1435 = vdwg.mxu0
        %1436 = vmatpush.msra.mxu0 0.0
        %1437 = vmatpush.msra.mxu0 0.0
        %1438 = vmatpush.msra.mxu0 0.0
        %1439 = vmatpush.msra.mxu0 0.0
        %1440 = vmatpush.msra.mxu0 0.0
        %1441 = vmatpush.msra.mxu0 0.0
        %1442 = vmatpush.msra.mxu0 0.0
        %1443 = vmatpush.msra.mxu0 0.0
        %1444 = vmatpush.msra.mxu0 0.0
        %1445 = vmatpush.msra.mxu0 0.0
        %1446 = vmatpush.msra.mxu0 0.0
        %1447 = vmatpush.msra.mxu0 0.0
        %1448 = vmatpush.msra.mxu0 0.0
        %1449 = vmatpush.msra.mxu0 0.0
        %1450 = vmatpush.msra.mxu0 0.0
        %1451 = vmatpush.msra.mxu0 %v1408
        %1452 = vmatmul.f32.gmra.mxu0 %v1414
        %v1453 = vpop.f32.mrf.mxu0
        %v1454 = vadd.f32 0.0, %v1453
        %1455 = vdwg.mxu0
        %v1456 = vadd.f32 %v1401, %v1434
        %v1457 = vadd.f32 %v1402, %v1454
        %v1458 = vld [vmem:[%s4] sm:$0xff]
        %1460 = vset.pattern.permute.xlu0 0
        %1461 = vperm.xlu0 %1460, %v1458
        %v1462 = vpop.permute.xlu0 %1461
        %v1464 = vadd.f32 %v1456, %v1462
        %v1465 = vadd.f32 %v1457, %v1462
        %v1466 = vmax.f32 %v1464, 0.0
        %v1467 = vmax.f32 %v1465, 0.0
        %1468 = vst [vmem:[%s241] sm:$0xff] %v1466
        %vm1469 = vcmask 130048
        %1470 = vst.msk [vmem:[%s241 + $0x8] sm:$0xff] %vm1469, %v1467
        %s1471 = sand.u32 %s153, 1
        %s1472 = scalar_lea.sflag [#allocation4], %s1471
        %s1473 = sand.u32 %s153, 1
        %s1474 = smul.addr %s1473, 16
        %s1475 = scalar_lea.vmem [#allocation3], %s1474
        // Predicated region
        $region49: #{tpu_custom_call.1} parent=39 // pred_check
          %p1476 = pneg %p163
        $region50: #{tpu_custom_call.1} parent=39 // pred_check_branch
          %1478 = sbr.rel (%p1476) target = $region52
        $region51: #{tpu_custom_call.1} parent=39 // pred_region
          %1480 = vsyncadd %s1472, 0
          %s1481 = smul.addr %s24, 2
          %s1482 = smul.addr %s23, 4
          %s1483 = sadd.s32 %s1481, %s1482
          %s1484 = smul.addr %s1483, 8
          %s1485 = scalar_lea.hbm %s5, %s1484
          %s1487 = sshll.u32 %s1475, 4
          %s1488 = int_to_ptr.vmem [resolvable:$true] %s1487
          %s1489 = sshll.u32 %s1485, 4
          %s1490 = int_to_ptr.hbm [resolvable:$true] %s1489
          %1492 = dma.vmem_to_hbm [thread:$0]  %s1488, 256, %s1490, %s1472
        $region52: #{tpu_custom_call.1} parent=39 // pred_fallthru
          _
      $region40: #{tpu_custom_call.1} parent=5 // pred_fallthru
        _
      %p1493 = scmp.le.s32.totalorder 2, %s14
      // Predicated region
      $region53: #{tpu_custom_call.1} parent=5 // pred_check
        %p1494 = pneg %p1493
      $region54: #{tpu_custom_call.1} parent=5 // pred_check_branch
        %1496 = sbr.rel (%p1494) target = $region56
      $region55: #{tpu_custom_call.1} parent=5 // pred_region
        %s1497 = ssub.s32 %s14, 2
        // Predicated region
        $region57: #{tpu_custom_call.1} parent=55 // pred_check
          %p1498 = pneg %p169
        $region58: #{tpu_custom_call.1} parent=55 // pred_check_branch
          %1500 = sbr.rel (%p1498) target = $region60
        $region59: #{tpu_custom_call.1} parent=55 // pred_region
          %s1501 = sand.u32 %s154, 1
          %s1502 = scalar_lea.sflag [#allocation4], %s1501
          %s1503 = sand.u32 %s154, 1
          %s1504 = smul.addr %s1503, 16
          %s1505 = scalar_lea.vmem [#allocation3], %s1504
          %1507 = dma.done %s1502, 256
        $region60: #{tpu_custom_call.1} parent=55 // pred_fallthru
          _
      $region56: #{tpu_custom_call.1} parent=5 // pred_fallthru
        _
    $region6: #{tpu_custom_call.1} parent=1 // loop_footer
      %s18 = sadd.s32 1, %s14
    $region7: #{tpu_custom_call.1} parent=1 // loop_footer_branch
      %13 = sbr.rel target = $region3
    $region8: #{tpu_custom_call.1} parent=1 // loop_exit
      _
    %1508 = vsyncpa [#allocation4], 1
    %s1509 = scalar_lea.sflag [#allocation4], 1
    %1510 = vsyncpa %s1509, 1

</llo_original>
